<compile_context>
chip_gen: v7x
topology: tpu7x:2x2x1
jax: 0.10.0
libtpu: 0.0.40
codegen_flags: <defaults>
</compile_context>

<pallas_src>
import jax
import jax.numpy as jnp
from jax.experimental import pallas as pl
from jax.experimental.pallas import tpu as pltpu


# ---------------------------------------------------------------------------
# Kernel factory: direct valid conv, stride 1, NCHW in / NCHW out.
#   x_ref : (N, Cin, H, W)            f32, VMEM (whole array)
#   w_ref : (Cout*Cin*KH*KW,)         f32, SMEM (scalars)
#   b_ref : (Cout,)                   f32, SMEM (scalars)
#   o_ref : (N, Cout, OH, OW)         f32, VMEM
# ---------------------------------------------------------------------------
def _make_conv_kernel(n, cin, h, w, cout, kh, kw):
    oh, ow = h - kh + 1, w - kw + 1

    def kernel(x_ref, w_ref, b_ref, o_ref):
        for nn in range(n):
            for co in range(cout):
                # init accumulator with the bias (scalar from SMEM)
                acc = jnp.zeros((oh, ow), jnp.float32) + b_ref[co]
                for ci in range(cin):
                    for i in range(kh):
                        for j in range(kw):
                            wv = w_ref[((co * cin + ci) * kh + i) * kw + j]
                            patch = x_ref[nn, ci, i:i + oh, j:j + ow]
                            acc = acc + wv * patch.astype(jnp.float32)
                o_ref[nn, co, :, :] = acc.astype(o_ref.dtype)

    return kernel


def conv2d_pallas(x, weight, bias):
    """Valid (no-padding, stride-1) conv, NCHW, like torch.nn.Conv2d."""
    n, cin, h, w = x.shape
    cout, cin2, kh, kw = weight.shape
    assert cin2 == cin
    oh, ow = h - kh + 1, w - kw + 1

    kernel = _make_conv_kernel(n, cin, h, w, cout, kh, kw)

    # Accurate (unpadded) cost estimate.
    flops = 2 * n * cout * cin * kh * kw * oh * ow
    bytes_accessed = 4 * (x.size + weight.size + bias.size + n * cout * oh * ow)

    return pl.pallas_call(
        kernel,
        out_shape=jax.ShapeDtypeStruct((n, cout, oh, ow), x.dtype),
        in_specs=[
            pl.BlockSpec(memory_space=pltpu.MemorySpace.VMEM),   # x (whole)
            pl.BlockSpec(memory_space=pltpu.MemorySpace.SMEM),   # weights (flat)
            pl.BlockSpec(memory_space=pltpu.MemorySpace.SMEM),   # bias
        ],
        out_specs=pl.BlockSpec(memory_space=pltpu.MemorySpace.VMEM),
        cost_estimate=pl.CostEstimate(
            flops=flops, transcendentals=0, bytes_accessed=bytes_accessed),
    )(x, weight.reshape(-1), bias)   # reshape of contiguous weights is a free bitcast


# ---------------------------------------------------------------------------
# Model
# ---------------------------------------------------------------------------
def init_params(key):
    k1, k2, k3, k4 = jax.random.split(key, 4)
    # Conv2d(3, 3, 3): fan_in = 3*3*3 = 27, PyTorch-style uniform bound
    bound = 1.0 / jnp.sqrt(27.0)
    return {
        "conv1_w": jax.random.uniform(k1, (3, 3, 3, 3), jnp.float32, -bound, bound),
        "conv1_b": jax.random.uniform(k2, (3,), jnp.float32, -bound, bound),
        # conv2 / bn parameters exist in the reference module but feed a dead
        # branch of forward(); kept only for parity, never used.
        "conv2_w": jax.random.uniform(k3, (3, 3, 3, 3), jnp.float32, -bound, bound),
        "conv2_b": jax.random.uniform(k4, (3,), jnp.float32, -bound, bound),
        "bn_gamma": jnp.ones((3,), jnp.float32),
        "bn_beta": jnp.zeros((3,), jnp.float32),
        "bn_mean": jnp.arange(3, dtype=jnp.float32),
        "bn_var": jnp.arange(3, dtype=jnp.float32) * 2 + 1,
    }


@jax.jit
def model_forward(params, x1, x2):
    # Reference forward: s = conv1(x1); t = conv2(s); y = bn(t); return s
    # t and y are dead code (discarded), so only conv1 is executed here.
    del x2
    return conv2d_pallas(x1, params["conv1_w"], params["conv1_b"])


if __name__ == "__main__":
    key = jax.random.PRNGKey(0)
    kp, kx1, kx2 = jax.random.split(key, 3)

    params = init_params(kp)
    x1 = jax.random.normal(kx1, (1, 3, 6, 6), jnp.float32)
    x2 = jax.random.normal(kx2, (1, 3, 6, 6), jnp.float32)  # unused, as in the module

    out = model_forward(params, x1, x2)
    jax.block_until_ready(out)

    assert out.shape == (1, 3, 4, 4), out.shape
    assert out.dtype == jnp.float32

    # Correctness check against XLA's conv (exact f32 path in the kernel,
    # HIGHEST precision on the reference -> tight tolerance).
    ref = jax.lax.conv_general_dilated(
        x1, params["conv1_w"], (1, 1), "VALID",
        dimension_numbers=("NCHW", "OIHW", "NCHW"),
        precision=jax.lax.Precision.HIGHEST,
    ) + params["conv1_b"].reshape(1, -1, 1, 1)
    assert jnp.allclose(out, ref, atol=1e-4, rtol=1e-4), \
        float(jnp.max(jnp.abs(out - ref)))

    print("KERNEL_OK")
</pallas_src>

<mosaic_0001>
module attributes {stable_mosaic.version = 11 : i64} {
  func.func @kernel(%arg0: memref<1x3x6x6xf32, #tpu.memory_space<vmem>>, %arg1: memref<81xf32, #tpu.memory_space<smem>>, %arg2: memref<3xf32, #tpu.memory_space<smem>>, %arg3: memref<1x3x4x4xf32, #tpu.memory_space<vmem>>) attributes {dimension_semantics = [], scalar_prefetch = 0 : i64, scratch_operands = 0 : i64, tpu.core_type = #tpu.core_type<tc>} {
    %cst = arith.constant 0.000000e+00 : f32
    %0 = vector.broadcast %cst : f32 to vector<4x4xf32>
    %c0 = arith.constant 0 : index
    %1 = memref.load %arg2[%c0] : memref<3xf32, #tpu.memory_space<smem>>
    %2 = vector.broadcast %1 : f32 to vector<4x4xf32>
    %3 = arith.addf %0, %2 : vector<4x4xf32>
    %c0_0 = arith.constant 0 : index
    %4 = memref.load %arg1[%c0_0] : memref<81xf32, #tpu.memory_space<smem>>
    %c0_1 = arith.constant 0 : index
    %c0_2 = arith.constant 0 : index
    %c0_3 = arith.constant 0 : index
    %c0_4 = arith.constant 0 : index
    %5 = vector.load %arg0[%c0_1, %c0_2, %c0_3, %c0_4] : memref<1x3x6x6xf32, #tpu.memory_space<vmem>>, vector<1x1x4x4xf32>
    %6 = vector.shape_cast %5 : vector<1x1x4x4xf32> to vector<4x4xf32>
    %7 = vector.broadcast %4 : f32 to vector<4x4xf32>
    %8 = arith.mulf %7, %6 : vector<4x4xf32>
    %9 = arith.addf %3, %8 : vector<4x4xf32>
    %c1 = arith.constant 1 : index
    %10 = memref.load %arg1[%c1] : memref<81xf32, #tpu.memory_space<smem>>
    %c0_5 = arith.constant 0 : index
    %c0_6 = arith.constant 0 : index
    %c0_7 = arith.constant 0 : index
    %c1_8 = arith.constant 1 : index
    %11 = vector.load %arg0[%c0_5, %c0_6, %c0_7, %c1_8] : memref<1x3x6x6xf32, #tpu.memory_space<vmem>>, vector<1x1x4x4xf32>
    %12 = vector.shape_cast %11 : vector<1x1x4x4xf32> to vector<4x4xf32>
    %13 = vector.broadcast %10 : f32 to vector<4x4xf32>
    %14 = arith.mulf %13, %12 : vector<4x4xf32>
    %15 = arith.addf %9, %14 : vector<4x4xf32>
    %c2 = arith.constant 2 : index
    %16 = memref.load %arg1[%c2] : memref<81xf32, #tpu.memory_space<smem>>
    %c0_9 = arith.constant 0 : index
    %c0_10 = arith.constant 0 : index
    %c0_11 = arith.constant 0 : index
    %c2_12 = arith.constant 2 : index
    %17 = vector.load %arg0[%c0_9, %c0_10, %c0_11, %c2_12] : memref<1x3x6x6xf32, #tpu.memory_space<vmem>>, vector<1x1x4x4xf32>
    %18 = vector.shape_cast %17 : vector<1x1x4x4xf32> to vector<4x4xf32>
    %19 = vector.broadcast %16 : f32 to vector<4x4xf32>
    %20 = arith.mulf %19, %18 : vector<4x4xf32>
    %21 = arith.addf %15, %20 : vector<4x4xf32>
    %c3 = arith.constant 3 : index
    %22 = memref.load %arg1[%c3] : memref<81xf32, #tpu.memory_space<smem>>
    %c0_13 = arith.constant 0 : index
    %c0_14 = arith.constant 0 : index
    %c1_15 = arith.constant 1 : index
    %c0_16 = arith.constant 0 : index
    %23 = vector.load %arg0[%c0_13, %c0_14, %c1_15, %c0_16] : memref<1x3x6x6xf32, #tpu.memory_space<vmem>>, vector<1x1x4x4xf32>
    %24 = vector.shape_cast %23 : vector<1x1x4x4xf32> to vector<4x4xf32>
    %25 = vector.broadcast %22 : f32 to vector<4x4xf32>
    %26 = arith.mulf %25, %24 : vector<4x4xf32>
    %27 = arith.addf %21, %26 : vector<4x4xf32>
    %c4 = arith.constant 4 : index
    %28 = memref.load %arg1[%c4] : memref<81xf32, #tpu.memory_space<smem>>
    %c0_17 = arith.constant 0 : index
    %c0_18 = arith.constant 0 : index
    %c1_19 = arith.constant 1 : index
    %c1_20 = arith.constant 1 : index
    %29 = vector.load %arg0[%c0_17, %c0_18, %c1_19, %c1_20] : memref<1x3x6x6xf32, #tpu.memory_space<vmem>>, vector<1x1x4x4xf32>
    %30 = vector.shape_cast %29 : vector<1x1x4x4xf32> to vector<4x4xf32>
    %31 = vector.broadcast %28 : f32 to vector<4x4xf32>
    %32 = arith.mulf %31, %30 : vector<4x4xf32>
    %33 = arith.addf %27, %32 : vector<4x4xf32>
    %c5 = arith.constant 5 : index
    %34 = memref.load %arg1[%c5] : memref<81xf32, #tpu.memory_space<smem>>
    %c0_21 = arith.constant 0 : index
    %c0_22 = arith.constant 0 : index
    %c1_23 = arith.constant 1 : index
    %c2_24 = arith.constant 2 : index
    %35 = vector.load %arg0[%c0_21, %c0_22, %c1_23, %c2_24] : memref<1x3x6x6xf32, #tpu.memory_space<vmem>>, vector<1x1x4x4xf32>
    %36 = vector.shape_cast %35 : vector<1x1x4x4xf32> to vector<4x4xf32>
    %37 = vector.broadcast %34 : f32 to vector<4x4xf32>
    %38 = arith.mulf %37, %36 : vector<4x4xf32>
    %39 = arith.addf %33, %38 : vector<4x4xf32>
    %c6 = arith.constant 6 : index
    %40 = memref.load %arg1[%c6] : memref<81xf32, #tpu.memory_space<smem>>
    %c0_25 = arith.constant 0 : index
    %c0_26 = arith.constant 0 : index
    %c2_27 = arith.constant 2 : index
    %c0_28 = arith.constant 0 : index
    %41 = vector.load %arg0[%c0_25, %c0_26, %c2_27, %c0_28] : memref<1x3x6x6xf32, #tpu.memory_space<vmem>>, vector<1x1x4x4xf32>
    %42 = vector.shape_cast %41 : vector<1x1x4x4xf32> to vector<4x4xf32>
    %43 = vector.broadcast %40 : f32 to vector<4x4xf32>
    %44 = arith.mulf %43, %42 : vector<4x4xf32>
    %45 = arith.addf %39, %44 : vector<4x4xf32>
    %c7 = arith.constant 7 : index
    %46 = memref.load %arg1[%c7] : memref<81xf32, #tpu.memory_space<smem>>
    %c0_29 = arith.constant 0 : index
    %c0_30 = arith.constant 0 : index
    %c2_31 = arith.constant 2 : index
    %c1_32 = arith.constant 1 : index
    %47 = vector.load %arg0[%c0_29, %c0_30, %c2_31, %c1_32] : memref<1x3x6x6xf32, #tpu.memory_space<vmem>>, vector<1x1x4x4xf32>
    %48 = vector.shape_cast %47 : vector<1x1x4x4xf32> to vector<4x4xf32>
    %49 = vector.broadcast %46 : f32 to vector<4x4xf32>
    %50 = arith.mulf %49, %48 : vector<4x4xf32>
    %51 = arith.addf %45, %50 : vector<4x4xf32>
    %c8 = arith.constant 8 : index
    %52 = memref.load %arg1[%c8] : memref<81xf32, #tpu.memory_space<smem>>
    %c0_33 = arith.constant 0 : index
    %c0_34 = arith.constant 0 : index
    %c2_35 = arith.constant 2 : index
    %c2_36 = arith.constant 2 : index
    %53 = vector.load %arg0[%c0_33, %c0_34, %c2_35, %c2_36] : memref<1x3x6x6xf32, #tpu.memory_space<vmem>>, vector<1x1x4x4xf32>
    %54 = vector.shape_cast %53 : vector<1x1x4x4xf32> to vector<4x4xf32>
    %55 = vector.broadcast %52 : f32 to vector<4x4xf32>
    %56 = arith.mulf %55, %54 : vector<4x4xf32>
    %57 = arith.addf %51, %56 : vector<4x4xf32>
    %c9 = arith.constant 9 : index
    %58 = memref.load %arg1[%c9] : memref<81xf32, #tpu.memory_space<smem>>
    %c0_37 = arith.constant 0 : index
    %c1_38 = arith.constant 1 : index
    %c0_39 = arith.constant 0 : index
    %c0_40 = arith.constant 0 : index
    %59 = vector.load %arg0[%c0_37, %c1_38, %c0_39, %c0_40] : memref<1x3x6x6xf32, #tpu.memory_space<vmem>>, vector<1x1x4x4xf32>
    %60 = vector.shape_cast %59 : vector<1x1x4x4xf32> to vector<4x4xf32>
    %61 = vector.broadcast %58 : f32 to vector<4x4xf32>
    %62 = arith.mulf %61, %60 : vector<4x4xf32>
    %63 = arith.addf %57, %62 : vector<4x4xf32>
    %c10 = arith.constant 10 : index
    %64 = memref.load %arg1[%c10] : memref<81xf32, #tpu.memory_space<smem>>
    %c0_41 = arith.constant 0 : index
    %c1_42 = arith.constant 1 : index
    %c0_43 = arith.constant 0 : index
    %c1_44 = arith.constant 1 : index
    %65 = vector.load %arg0[%c0_41, %c1_42, %c0_43, %c1_44] : memref<1x3x6x6xf32, #tpu.memory_space<vmem>>, vector<1x1x4x4xf32>
    %66 = vector.shape_cast %65 : vector<1x1x4x4xf32> to vector<4x4xf32>
    %67 = vector.broadcast %64 : f32 to vector<4x4xf32>
    %68 = arith.mulf %67, %66 : vector<4x4xf32>
    %69 = arith.addf %63, %68 : vector<4x4xf32>
    %c11 = arith.constant 11 : index
    %70 = memref.load %arg1[%c11] : memref<81xf32, #tpu.memory_space<smem>>
    %c0_45 = arith.constant 0 : index
    %c1_46 = arith.constant 1 : index
    %c0_47 = arith.constant 0 : index
    %c2_48 = arith.constant 2 : index
    %71 = vector.load %arg0[%c0_45, %c1_46, %c0_47, %c2_48] : memref<1x3x6x6xf32, #tpu.memory_space<vmem>>, vector<1x1x4x4xf32>
    %72 = vector.shape_cast %71 : vector<1x1x4x4xf32> to vector<4x4xf32>
    %73 = vector.broadcast %70 : f32 to vector<4x4xf32>
    %74 = arith.mulf %73, %72 : vector<4x4xf32>
    %75 = arith.addf %69, %74 : vector<4x4xf32>
    %c12 = arith.constant 12 : index
    %76 = memref.load %arg1[%c12] : memref<81xf32, #tpu.memory_space<smem>>
    %c0_49 = arith.constant 0 : index
    %c1_50 = arith.constant 1 : index
    %c1_51 = arith.constant 1 : index
    %c0_52 = arith.constant 0 : index
    %77 = vector.load %arg0[%c0_49, %c1_50, %c1_51, %c0_52] : memref<1x3x6x6xf32, #tpu.memory_space<vmem>>, vector<1x1x4x4xf32>
    %78 = vector.shape_cast %77 : vector<1x1x4x4xf32> to vector<4x4xf32>
    %79 = vector.broadcast %76 : f32 to vector<4x4xf32>
    %80 = arith.mulf %79, %78 : vector<4x4xf32>
    %81 = arith.addf %75, %80 : vector<4x4xf32>
    %c13 = arith.constant 13 : index
    %82 = memref.load %arg1[%c13] : memref<81xf32, #tpu.memory_space<smem>>
    %c0_53 = arith.constant 0 : index
    %c1_54 = arith.constant 1 : index
    %c1_55 = arith.constant 1 : index
    %c1_56 = arith.constant 1 : index
    %83 = vector.load %arg0[%c0_53, %c1_54, %c1_55, %c1_56] : memref<1x3x6x6xf32, #tpu.memory_space<vmem>>, vector<1x1x4x4xf32>
    %84 = vector.shape_cast %83 : vector<1x1x4x4xf32> to vector<4x4xf32>
    %85 = vector.broadcast %82 : f32 to vector<4x4xf32>
    %86 = arith.mulf %85, %84 : vector<4x4xf32>
    %87 = arith.addf %81, %86 : vector<4x4xf32>
    %c14 = arith.constant 14 : index
    %88 = memref.load %arg1[%c14] : memref<81xf32, #tpu.memory_space<smem>>
    %c0_57 = arith.constant 0 : index
    %c1_58 = arith.constant 1 : index
    %c1_59 = arith.constant 1 : index
    %c2_60 = arith.constant 2 : index
    %89 = vector.load %arg0[%c0_57, %c1_58, %c1_59, %c2_60] : memref<1x3x6x6xf32, #tpu.memory_space<vmem>>, vector<1x1x4x4xf32>
    %90 = vector.shape_cast %89 : vector<1x1x4x4xf32> to vector<4x4xf32>
    %91 = vector.broadcast %88 : f32 to vector<4x4xf32>
    %92 = arith.mulf %91, %90 : vector<4x4xf32>
    %93 = arith.addf %87, %92 : vector<4x4xf32>
    %c15 = arith.constant 15 : index
    %94 = memref.load %arg1[%c15] : memref<81xf32, #tpu.memory_space<smem>>
    %c0_61 = arith.constant 0 : index
    %c1_62 = arith.constant 1 : index
    %c2_63 = arith.constant 2 : index
    %c0_64 = arith.constant 0 : index
    %95 = vector.load %arg0[%c0_61, %c1_62, %c2_63, %c0_64] : memref<1x3x6x6xf32, #tpu.memory_space<vmem>>, vector<1x1x4x4xf32>
    %96 = vector.shape_cast %95 : vector<1x1x4x4xf32> to vector<4x4xf32>
    %97 = vector.broadcast %94 : f32 to vector<4x4xf32>
    %98 = arith.mulf %97, %96 : vector<4x4xf32>
    %99 = arith.addf %93, %98 : vector<4x4xf32>
    %c16 = arith.constant 16 : index
    %100 = memref.load %arg1[%c16] : memref<81xf32, #tpu.memory_space<smem>>
    %c0_65 = arith.constant 0 : index
    %c1_66 = arith.constant 1 : index
    %c2_67 = arith.constant 2 : index
    %c1_68 = arith.constant 1 : index
    %101 = vector.load %arg0[%c0_65, %c1_66, %c2_67, %c1_68] : memref<1x3x6x6xf32, #tpu.memory_space<vmem>>, vector<1x1x4x4xf32>
    %102 = vector.shape_cast %101 : vector<1x1x4x4xf32> to vector<4x4xf32>
    %103 = vector.broadcast %100 : f32 to vector<4x4xf32>
    %104 = arith.mulf %103, %102 : vector<4x4xf32>
    %105 = arith.addf %99, %104 : vector<4x4xf32>
    %c17 = arith.constant 17 : index
    %106 = memref.load %arg1[%c17] : memref<81xf32, #tpu.memory_space<smem>>
    %c0_69 = arith.constant 0 : index
    %c1_70 = arith.constant 1 : index
    %c2_71 = arith.constant 2 : index
    %c2_72 = arith.constant 2 : index
    %107 = vector.load %arg0[%c0_69, %c1_70, %c2_71, %c2_72] : memref<1x3x6x6xf32, #tpu.memory_space<vmem>>, vector<1x1x4x4xf32>
    %108 = vector.shape_cast %107 : vector<1x1x4x4xf32> to vector<4x4xf32>
    %109 = vector.broadcast %106 : f32 to vector<4x4xf32>
    %110 = arith.mulf %109, %108 : vector<4x4xf32>
    %111 = arith.addf %105, %110 : vector<4x4xf32>
    %c18 = arith.constant 18 : index
    %112 = memref.load %arg1[%c18] : memref<81xf32, #tpu.memory_space<smem>>
    %c0_73 = arith.constant 0 : index
    %c2_74 = arith.constant 2 : index
    %c0_75 = arith.constant 0 : index
    %c0_76 = arith.constant 0 : index
    %113 = vector.load %arg0[%c0_73, %c2_74, %c0_75, %c0_76] : memref<1x3x6x6xf32, #tpu.memory_space<vmem>>, vector<1x1x4x4xf32>
    %114 = vector.shape_cast %113 : vector<1x1x4x4xf32> to vector<4x4xf32>
    %115 = vector.broadcast %112 : f32 to vector<4x4xf32>
    %116 = arith.mulf %115, %114 : vector<4x4xf32>
    %117 = arith.addf %111, %116 : vector<4x4xf32>
    %c19 = arith.constant 19 : index
    %118 = memref.load %arg1[%c19] : memref<81xf32, #tpu.memory_space<smem>>
    %c0_77 = arith.constant 0 : index
    %c2_78 = arith.constant 2 : index
    %c0_79 = arith.constant 0 : index
    %c1_80 = arith.constant 1 : index
    %119 = vector.load %arg0[%c0_77, %c2_78, %c0_79, %c1_80] : memref<1x3x6x6xf32, #tpu.memory_space<vmem>>, vector<1x1x4x4xf32>
    %120 = vector.shape_cast %119 : vector<1x1x4x4xf32> to vector<4x4xf32>
    %121 = vector.broadcast %118 : f32 to vector<4x4xf32>
    %122 = arith.mulf %121, %120 : vector<4x4xf32>
    %123 = arith.addf %117, %122 : vector<4x4xf32>
    %c20 = arith.constant 20 : index
    %124 = memref.load %arg1[%c20] : memref<81xf32, #tpu.memory_space<smem>>
    %c0_81 = arith.constant 0 : index
    %c2_82 = arith.constant 2 : index
    %c0_83 = arith.constant 0 : index
    %c2_84 = arith.constant 2 : index
    %125 = vector.load %arg0[%c0_81, %c2_82, %c0_83, %c2_84] : memref<1x3x6x6xf32, #tpu.memory_space<vmem>>, vector<1x1x4x4xf32>
    %126 = vector.shape_cast %125 : vector<1x1x4x4xf32> to vector<4x4xf32>
    %127 = vector.broadcast %124 : f32 to vector<4x4xf32>
    %128 = arith.mulf %127, %126 : vector<4x4xf32>
    %129 = arith.addf %123, %128 : vector<4x4xf32>
    %c21 = arith.constant 21 : index
    %130 = memref.load %arg1[%c21] : memref<81xf32, #tpu.memory_space<smem>>
    %c0_85 = arith.constant 0 : index
    %c2_86 = arith.constant 2 : index
    %c1_87 = arith.constant 1 : index
    %c0_88 = arith.constant 0 : index
    %131 = vector.load %arg0[%c0_85, %c2_86, %c1_87, %c0_88] : memref<1x3x6x6xf32, #tpu.memory_space<vmem>>, vector<1x1x4x4xf32>
    %132 = vector.shape_cast %131 : vector<1x1x4x4xf32> to vector<4x4xf32>
    %133 = vector.broadcast %130 : f32 to vector<4x4xf32>
    %134 = arith.mulf %133, %132 : vector<4x4xf32>
    %135 = arith.addf %129, %134 : vector<4x4xf32>
    %c22 = arith.constant 22 : index
    %136 = memref.load %arg1[%c22] : memref<81xf32, #tpu.memory_space<smem>>
    %c0_89 = arith.constant 0 : index
    %c2_90 = arith.constant 2 : index
    %c1_91 = arith.constant 1 : index
    %c1_92 = arith.constant 1 : index
    %137 = vector.load %arg0[%c0_89, %c2_90, %c1_91, %c1_92] : memref<1x3x6x6xf32, #tpu.memory_space<vmem>>, vector<1x1x4x4xf32>
    %138 = vector.shape_cast %137 : vector<1x1x4x4xf32> to vector<4x4xf32>
    %139 = vector.broadcast %136 : f32 to vector<4x4xf32>
    %140 = arith.mulf %139, %138 : vector<4x4xf32>
    %141 = arith.addf %135, %140 : vector<4x4xf32>
    %c23 = arith.constant 23 : index
    %142 = memref.load %arg1[%c23] : memref<81xf32, #tpu.memory_space<smem>>
    %c0_93 = arith.constant 0 : index
    %c2_94 = arith.constant 2 : index
    %c1_95 = arith.constant 1 : index
    %c2_96 = arith.constant 2 : index
    %143 = vector.load %arg0[%c0_93, %c2_94, %c1_95, %c2_96] : memref<1x3x6x6xf32, #tpu.memory_space<vmem>>, vector<1x1x4x4xf32>
    %144 = vector.shape_cast %143 : vector<1x1x4x4xf32> to vector<4x4xf32>
    %145 = vector.broadcast %142 : f32 to vector<4x4xf32>
    %146 = arith.mulf %145, %144 : vector<4x4xf32>
    %147 = arith.addf %141, %146 : vector<4x4xf32>
    %c24 = arith.constant 24 : index
    %148 = memref.load %arg1[%c24] : memref<81xf32, #tpu.memory_space<smem>>
    %c0_97 = arith.constant 0 : index
    %c2_98 = arith.constant 2 : index
    %c2_99 = arith.constant 2 : index
    %c0_100 = arith.constant 0 : index
    %149 = vector.load %arg0[%c0_97, %c2_98, %c2_99, %c0_100] : memref<1x3x6x6xf32, #tpu.memory_space<vmem>>, vector<1x1x4x4xf32>
    %150 = vector.shape_cast %149 : vector<1x1x4x4xf32> to vector<4x4xf32>
    %151 = vector.broadcast %148 : f32 to vector<4x4xf32>
    %152 = arith.mulf %151, %150 : vector<4x4xf32>
    %153 = arith.addf %147, %152 : vector<4x4xf32>
    %c25 = arith.constant 25 : index
    %154 = memref.load %arg1[%c25] : memref<81xf32, #tpu.memory_space<smem>>
    %c0_101 = arith.constant 0 : index
    %c2_102 = arith.constant 2 : index
    %c2_103 = arith.constant 2 : index
    %c1_104 = arith.constant 1 : index
    %155 = vector.load %arg0[%c0_101, %c2_102, %c2_103, %c1_104] : memref<1x3x6x6xf32, #tpu.memory_space<vmem>>, vector<1x1x4x4xf32>
    %156 = vector.shape_cast %155 : vector<1x1x4x4xf32> to vector<4x4xf32>
    %157 = vector.broadcast %154 : f32 to vector<4x4xf32>
    %158 = arith.mulf %157, %156 : vector<4x4xf32>
    %159 = arith.addf %153, %158 : vector<4x4xf32>
    %c26 = arith.constant 26 : index
    %160 = memref.load %arg1[%c26] : memref<81xf32, #tpu.memory_space<smem>>
    %c0_105 = arith.constant 0 : index
    %c2_106 = arith.constant 2 : index
    %c2_107 = arith.constant 2 : index
    %c2_108 = arith.constant 2 : index
    %161 = vector.load %arg0[%c0_105, %c2_106, %c2_107, %c2_108] : memref<1x3x6x6xf32, #tpu.memory_space<vmem>>, vector<1x1x4x4xf32>
    %162 = vector.shape_cast %161 : vector<1x1x4x4xf32> to vector<4x4xf32>
    %163 = vector.broadcast %160 : f32 to vector<4x4xf32>
    %164 = arith.mulf %163, %162 : vector<4x4xf32>
    %165 = arith.addf %159, %164 : vector<4x4xf32>
    %c0_109 = arith.constant 0 : index
    %c0_110 = arith.constant 0 : index
    %c0_111 = arith.constant 0 : index
    %c0_112 = arith.constant 0 : index
    %166 = vector.load %arg3[%c0_109, %c0_110, %c0_111, %c0_112] : memref<1x3x4x4xf32, #tpu.memory_space<vmem>>, vector<1x1x4x4xf32>
    %167 = vector.shape_cast %166 : vector<1x1x4x4xf32> to vector<4x4xf32>
    %168 = vector.shape_cast %165 : vector<4x4xf32> to vector<1x1x4x4xf32>
    tpu.vector_store %arg3[%c0_109, %c0_110, %c0_111, %c0_112], %168 {strides = array<i32>} : memref<1x3x4x4xf32, #tpu.memory_space<vmem>>, vector<1x1x4x4xf32>,
    %cst_113 = arith.constant 0.000000e+00 : f32
    %169 = vector.broadcast %cst_113 : f32 to vector<4x4xf32>
    %c1_114 = arith.constant 1 : index
    %170 = memref.load %arg2[%c1_114] : memref<3xf32, #tpu.memory_space<smem>>
    %171 = vector.broadcast %170 : f32 to vector<4x4xf32>
    %172 = arith.addf %169, %171 : vector<4x4xf32>
    %c27 = arith.constant 27 : index
    %173 = memref.load %arg1[%c27] : memref<81xf32, #tpu.memory_space<smem>>
    %c0_115 = arith.constant 0 : index
    %c0_116 = arith.constant 0 : index
    %c0_117 = arith.constant 0 : index
    %c0_118 = arith.constant 0 : index
    %174 = vector.load %arg0[%c0_115, %c0_116, %c0_117, %c0_118] : memref<1x3x6x6xf32, #tpu.memory_space<vmem>>, vector<1x1x4x4xf32>
    %175 = vector.shape_cast %174 : vector<1x1x4x4xf32> to vector<4x4xf32>
    %176 = vector.broadcast %173 : f32 to vector<4x4xf32>
    %177 = arith.mulf %176, %175 : vector<4x4xf32>
    %178 = arith.addf %172, %177 : vector<4x4xf32>
    %c28 = arith.constant 28 : index
    %179 = memref.load %arg1[%c28] : memref<81xf32, #tpu.memory_space<smem>>
    %c0_119 = arith.constant 0 : index
    %c0_120 = arith.constant 0 : index
    %c0_121 = arith.constant 0 : index
    %c1_122 = arith.constant 1 : index
    %180 = vector.load %arg0[%c0_119, %c0_120, %c0_121, %c1_122] : memref<1x3x6x6xf32, #tpu.memory_space<vmem>>, vector<1x1x4x4xf32>
    %181 = vector.shape_cast %180 : vector<1x1x4x4xf32> to vector<4x4xf32>
    %182 = vector.broadcast %179 : f32 to vector<4x4xf32>
    %183 = arith.mulf %182, %181 : vector<4x4xf32>
    %184 = arith.addf %178, %183 : vector<4x4xf32>
    %c29 = arith.constant 29 : index
    %185 = memref.load %arg1[%c29] : memref<81xf32, #tpu.memory_space<smem>>
    %c0_123 = arith.constant 0 : index
    %c0_124 = arith.constant 0 : index
    %c0_125 = arith.constant 0 : index
    %c2_126 = arith.constant 2 : index
    %186 = vector.load %arg0[%c0_123, %c0_124, %c0_125, %c2_126] : memref<1x3x6x6xf32, #tpu.memory_space<vmem>>, vector<1x1x4x4xf32>
    %187 = vector.shape_cast %186 : vector<1x1x4x4xf32> to vector<4x4xf32>
    %188 = vector.broadcast %185 : f32 to vector<4x4xf32>
    %189 = arith.mulf %188, %187 : vector<4x4xf32>
    %190 = arith.addf %184, %189 : vector<4x4xf32>
    %c30 = arith.constant 30 : index
    %191 = memref.load %arg1[%c30] : memref<81xf32, #tpu.memory_space<smem>>
    %c0_127 = arith.constant 0 : index
    %c0_128 = arith.constant 0 : index
    %c1_129 = arith.constant 1 : index
    %c0_130 = arith.constant 0 : index
    %192 = vector.load %arg0[%c0_127, %c0_128, %c1_129, %c0_130] : memref<1x3x6x6xf32, #tpu.memory_space<vmem>>, vector<1x1x4x4xf32>
    %193 = vector.shape_cast %192 : vector<1x1x4x4xf32> to vector<4x4xf32>
    %194 = vector.broadcast %191 : f32 to vector<4x4xf32>
    %195 = arith.mulf %194, %193 : vector<4x4xf32>
    %196 = arith.addf %190, %195 : vector<4x4xf32>
    %c31 = arith.constant 31 : index
    %197 = memref.load %arg1[%c31] : memref<81xf32, #tpu.memory_space<smem>>
    %c0_131 = arith.constant 0 : index
    %c0_132 = arith.constant 0 : index
    %c1_133 = arith.constant 1 : index
    %c1_134 = arith.constant 1 : index
    %198 = vector.load %arg0[%c0_131, %c0_132, %c1_133, %c1_134] : memref<1x3x6x6xf32, #tpu.memory_space<vmem>>, vector<1x1x4x4xf32>
    %199 = vector.shape_cast %198 : vector<1x1x4x4xf32> to vector<4x4xf32>
    %200 = vector.broadcast %197 : f32 to vector<4x4xf32>
    %201 = arith.mulf %200, %199 : vector<4x4xf32>
    %202 = arith.addf %196, %201 : vector<4x4xf32>
    %c32 = arith.constant 32 : index
    %203 = memref.load %arg1[%c32] : memref<81xf32, #tpu.memory_space<smem>>
    %c0_135 = arith.constant 0 : index
    %c0_136 = arith.constant 0 : index
    %c1_137 = arith.constant 1 : index
    %c2_138 = arith.constant 2 : index
    %204 = vector.load %arg0[%c0_135, %c0_136, %c1_137, %c2_138] : memref<1x3x6x6xf32, #tpu.memory_space<vmem>>, vector<1x1x4x4xf32>
    %205 = vector.shape_cast %204 : vector<1x1x4x4xf32> to vector<4x4xf32>
    %206 = vector.broadcast %203 : f32 to vector<4x4xf32>
    %207 = arith.mulf %206, %205 : vector<4x4xf32>
    %208 = arith.addf %202, %207 : vector<4x4xf32>
    %c33 = arith.constant 33 : index
    %209 = memref.load %arg1[%c33] : memref<81xf32, #tpu.memory_space<smem>>
    %c0_139 = arith.constant 0 : index
    %c0_140 = arith.constant 0 : index
    %c2_141 = arith.constant 2 : index
    %c0_142 = arith.constant 0 : index
    %210 = vector.load %arg0[%c0_139, %c0_140, %c2_141, %c0_142] : memref<1x3x6x6xf32, #tpu.memory_space<vmem>>, vector<1x1x4x4xf32>
    %211 = vector.shape_cast %210 : vector<1x1x4x4xf32> to vector<4x4xf32>
    %212 = vector.broadcast %209 : f32 to vector<4x4xf32>
    %213 = arith.mulf %212, %211 : vector<4x4xf32>
    %214 = arith.addf %208, %213 : vector<4x4xf32>
    %c34 = arith.constant 34 : index
    %215 = memref.load %arg1[%c34] : memref<81xf32, #tpu.memory_space<smem>>
    %c0_143 = arith.constant 0 : index
    %c0_144 = arith.constant 0 : index
    %c2_145 = arith.constant 2 : index
    %c1_146 = arith.constant 1 : index
    %216 = vector.load %arg0[%c0_143, %c0_144, %c2_145, %c1_146] : memref<1x3x6x6xf32, #tpu.memory_space<vmem>>, vector<1x1x4x4xf32>
    %217 = vector.shape_cast %216 : vector<1x1x4x4xf32> to vector<4x4xf32>
    %218 = vector.broadcast %215 : f32 to vector<4x4xf32>
    %219 = arith.mulf %218, %217 : vector<4x4xf32>
    %220 = arith.addf %214, %219 : vector<4x4xf32>
    %c35 = arith.constant 35 : index
    %221 = memref.load %arg1[%c35] : memref<81xf32, #tpu.memory_space<smem>>
    %c0_147 = arith.constant 0 : index
    %c0_148 = arith.constant 0 : index
    %c2_149 = arith.constant 2 : index
    %c2_150 = arith.constant 2 : index
    %222 = vector.load %arg0[%c0_147, %c0_148, %c2_149, %c2_150] : memref<1x3x6x6xf32, #tpu.memory_space<vmem>>, vector<1x1x4x4xf32>
    %223 = vector.shape_cast %222 : vector<1x1x4x4xf32> to vector<4x4xf32>
    %224 = vector.broadcast %221 : f32 to vector<4x4xf32>
    %225 = arith.mulf %224, %223 : vector<4x4xf32>
    %226 = arith.addf %220, %225 : vector<4x4xf32>
    %c36 = arith.constant 36 : index
    %227 = memref.load %arg1[%c36] : memref<81xf32, #tpu.memory_space<smem>>
    %c0_151 = arith.constant 0 : index
    %c1_152 = arith.constant 1 : index
    %c0_153 = arith.constant 0 : index
    %c0_154 = arith.constant 0 : index
    %228 = vector.load %arg0[%c0_151, %c1_152, %c0_153, %c0_154] : memref<1x3x6x6xf32, #tpu.memory_space<vmem>>, vector<1x1x4x4xf32>
    %229 = vector.shape_cast %228 : vector<1x1x4x4xf32> to vector<4x4xf32>
    %230 = vector.broadcast %227 : f32 to vector<4x4xf32>
    %231 = arith.mulf %230, %229 : vector<4x4xf32>
    %232 = arith.addf %226, %231 : vector<4x4xf32>
    %c37 = arith.constant 37 : index
    %233 = memref.load %arg1[%c37] : memref<81xf32, #tpu.memory_space<smem>>
    %c0_155 = arith.constant 0 : index
    %c1_156 = arith.constant 1 : index
    %c0_157 = arith.constant 0 : index
    %c1_158 = arith.constant 1 : index
    %234 = vector.load %arg0[%c0_155, %c1_156, %c0_157, %c1_158] : memref<1x3x6x6xf32, #tpu.memory_space<vmem>>, vector<1x1x4x4xf32>
    %235 = vector.shape_cast %234 : vector<1x1x4x4xf32> to vector<4x4xf32>
    %236 = vector.broadcast %233 : f32 to vector<4x4xf32>
    %237 = arith.mulf %236, %235 : vector<4x4xf32>
    %238 = arith.addf %232, %237 : vector<4x4xf32>
    %c38 = arith.constant 38 : index
    %239 = memref.load %arg1[%c38] : memref<81xf32, #tpu.memory_space<smem>>
    %c0_159 = arith.constant 0 : index
    %c1_160 = arith.constant 1 : index
    %c0_161 = arith.constant 0 : index
    %c2_162 = arith.constant 2 : index
    %240 = vector.load %arg0[%c0_159, %c1_160, %c0_161, %c2_162] : memref<1x3x6x6xf32, #tpu.memory_space<vmem>>, vector<1x1x4x4xf32>
    %241 = vector.shape_cast %240 : vector<1x1x4x4xf32> to vector<4x4xf32>
    %242 = vector.broadcast %239 : f32 to vector<4x4xf32>
    %243 = arith.mulf %242, %241 : vector<4x4xf32>
    %244 = arith.addf %238, %243 : vector<4x4xf32>
    %c39 = arith.constant 39 : index
    %245 = memref.load %arg1[%c39] : memref<81xf32, #tpu.memory_space<smem>>
    %c0_163 = arith.constant 0 : index
    %c1_164 = arith.constant 1 : index
    %c1_165 = arith.constant 1 : index
    %c0_166 = arith.constant 0 : index
    %246 = vector.load %arg0[%c0_163, %c1_164, %c1_165, %c0_166] : memref<1x3x6x6xf32, #tpu.memory_space<vmem>>, vector<1x1x4x4xf32>
    %247 = vector.shape_cast %246 : vector<1x1x4x4xf32> to vector<4x4xf32>
    %248 = vector.broadcast %245 : f32 to vector<4x4xf32>
    %249 = arith.mulf %248, %247 : vector<4x4xf32>
    %250 = arith.addf %244, %249 : vector<4x4xf32>
    %c40 = arith.constant 40 : index
    %251 = memref.load %arg1[%c40] : memref<81xf32, #tpu.memory_space<smem>>
    %c0_167 = arith.constant 0 : index
    %c1_168 = arith.constant 1 : index
    %c1_169 = arith.constant 1 : index
    %c1_170 = arith.constant 1 : index
    %252 = vector.load %arg0[%c0_167, %c1_168, %c1_169, %c1_170] : memref<1x3x6x6xf32, #tpu.memory_space<vmem>>, vector<1x1x4x4xf32>
    %253 = vector.shape_cast %252 : vector<1x1x4x4xf32> to vector<4x4xf32>
    %254 = vector.broadcast %251 : f32 to vector<4x4xf32>
    %255 = arith.mulf %254, %253 : vector<4x4xf32>
    %256 = arith.addf %250, %255 : vector<4x4xf32>
    %c41 = arith.constant 41 : index
    %257 = memref.load %arg1[%c41] : memref<81xf32, #tpu.memory_space<smem>>
    %c0_171 = arith.constant 0 : index
    %c1_172 = arith.constant 1 : index
    %c1_173 = arith.constant 1 : index
    %c2_174 = arith.constant 2 : index
    %258 = vector.load %arg0[%c0_171, %c1_172, %c1_173, %c2_174] : memref<1x3x6x6xf32, #tpu.memory_space<vmem>>, vector<1x1x4x4xf32>
    %259 = vector.shape_cast %258 : vector<1x1x4x4xf32> to vector<4x4xf32>
    %260 = vector.broadcast %257 : f32 to vector<4x4xf32>
    %261 = arith.mulf %260, %259 : vector<4x4xf32>
    %262 = arith.addf %256, %261 : vector<4x4xf32>
    %c42 = arith.constant 42 : index
    %263 = memref.load %arg1[%c42] : memref<81xf32, #tpu.memory_space<smem>>
    %c0_175 = arith.constant 0 : index
    %c1_176 = arith.constant 1 : index
    %c2_177 = arith.constant 2 : index
    %c0_178 = arith.constant 0 : index
    %264 = vector.load %arg0[%c0_175, %c1_176, %c2_177, %c0_178] : memref<1x3x6x6xf32, #tpu.memory_space<vmem>>, vector<1x1x4x4xf32>
    %265 = vector.shape_cast %264 : vector<1x1x4x4xf32> to vector<4x4xf32>
    %266 = vector.broadcast %263 : f32 to vector<4x4xf32>
    %267 = arith.mulf %266, %265 : vector<4x4xf32>
    %268 = arith.addf %262, %267 : vector<4x4xf32>
    %c43 = arith.constant 43 : index
    %269 = memref.load %arg1[%c43] : memref<81xf32, #tpu.memory_space<smem>>
    %c0_179 = arith.constant 0 : index
    %c1_180 = arith.constant 1 : index
    %c2_181 = arith.constant 2 : index
    %c1_182 = arith.constant 1 : index
    %270 = vector.load %arg0[%c0_179, %c1_180, %c2_181, %c1_182] : memref<1x3x6x6xf32, #tpu.memory_space<vmem>>, vector<1x1x4x4xf32>
    %271 = vector.shape_cast %270 : vector<1x1x4x4xf32> to vector<4x4xf32>
    %272 = vector.broadcast %269 : f32 to vector<4x4xf32>
    %273 = arith.mulf %272, %271 : vector<4x4xf32>
    %274 = arith.addf %268, %273 : vector<4x4xf32>
    %c44 = arith.constant 44 : index
    %275 = memref.load %arg1[%c44] : memref<81xf32, #tpu.memory_space<smem>>
    %c0_183 = arith.constant 0 : index
    %c1_184 = arith.constant 1 : index
    %c2_185 = arith.constant 2 : index
    %c2_186 = arith.constant 2 : index
    %276 = vector.load %arg0[%c0_183, %c1_184, %c2_185, %c2_186] : memref<1x3x6x6xf32, #tpu.memory_space<vmem>>, vector<1x1x4x4xf32>
    %277 = vector.shape_cast %276 : vector<1x1x4x4xf32> to vector<4x4xf32>
    %278 = vector.broadcast %275 : f32 to vector<4x4xf32>
    %279 = arith.mulf %278, %277 : vector<4x4xf32>
    %280 = arith.addf %274, %279 : vector<4x4xf32>
    %c45 = arith.constant 45 : index
    %281 = memref.load %arg1[%c45] : memref<81xf32, #tpu.memory_space<smem>>
    %c0_187 = arith.constant 0 : index
    %c2_188 = arith.constant 2 : index
    %c0_189 = arith.constant 0 : index
    %c0_190 = arith.constant 0 : index
    %282 = vector.load %arg0[%c0_187, %c2_188, %c0_189, %c0_190] : memref<1x3x6x6xf32, #tpu.memory_space<vmem>>, vector<1x1x4x4xf32>
    %283 = vector.shape_cast %282 : vector<1x1x4x4xf32> to vector<4x4xf32>
    %284 = vector.broadcast %281 : f32 to vector<4x4xf32>
    %285 = arith.mulf %284, %283 : vector<4x4xf32>
    %286 = arith.addf %280, %285 : vector<4x4xf32>
    %c46 = arith.constant 46 : index
    %287 = memref.load %arg1[%c46] : memref<81xf32, #tpu.memory_space<smem>>
    %c0_191 = arith.constant 0 : index
    %c2_192 = arith.constant 2 : index
    %c0_193 = arith.constant 0 : index
    %c1_194 = arith.constant 1 : index
    %288 = vector.load %arg0[%c0_191, %c2_192, %c0_193, %c1_194] : memref<1x3x6x6xf32, #tpu.memory_space<vmem>>, vector<1x1x4x4xf32>
    %289 = vector.shape_cast %288 : vector<1x1x4x4xf32> to vector<4x4xf32>
    %290 = vector.broadcast %287 : f32 to vector<4x4xf32>
    %291 = arith.mulf %290, %289 : vector<4x4xf32>
    %292 = arith.addf %286, %291 : vector<4x4xf32>
    %c47 = arith.constant 47 : index
    %293 = memref.load %arg1[%c47] : memref<81xf32, #tpu.memory_space<smem>>
    %c0_195 = arith.constant 0 : index
    %c2_196 = arith.constant 2 : index
    %c0_197 = arith.constant 0 : index
    %c2_198 = arith.constant 2 : index
    %294 = vector.load %arg0[%c0_195, %c2_196, %c0_197, %c2_198] : memref<1x3x6x6xf32, #tpu.memory_space<vmem>>, vector<1x1x4x4xf32>
    %295 = vector.shape_cast %294 : vector<1x1x4x4xf32> to vector<4x4xf32>
    %296 = vector.broadcast %293 : f32 to vector<4x4xf32>
    %297 = arith.mulf %296, %295 : vector<4x4xf32>
    %298 = arith.addf %292, %297 : vector<4x4xf32>
    %c48 = arith.constant 48 : index
    %299 = memref.load %arg1[%c48] : memref<81xf32, #tpu.memory_space<smem>>
    %c0_199 = arith.constant 0 : index
    %c2_200 = arith.constant 2 : index
    %c1_201 = arith.constant 1 : index
    %c0_202 = arith.constant 0 : index
    %300 = vector.load %arg0[%c0_199, %c2_200, %c1_201, %c0_202] : memref<1x3x6x6xf32, #tpu.memory_space<vmem>>, vector<1x1x4x4xf32>
    %301 = vector.shape_cast %300 : vector<1x1x4x4xf32> to vector<4x4xf32>
    %302 = vector.broadcast %299 : f32 to vector<4x4xf32>
    %303 = arith.mulf %302, %301 : vector<4x4xf32>
    %304 = arith.addf %298, %303 : vector<4x4xf32>
    %c49 = arith.constant 49 : index
    %305 = memref.load %arg1[%c49] : memref<81xf32, #tpu.memory_space<smem>>
    %c0_203 = arith.constant 0 : index
    %c2_204 = arith.constant 2 : index
    %c1_205 = arith.constant 1 : index
    %c1_206 = arith.constant 1 : index
    %306 = vector.load %arg0[%c0_203, %c2_204, %c1_205, %c1_206] : memref<1x3x6x6xf32, #tpu.memory_space<vmem>>, vector<1x1x4x4xf32>
    %307 = vector.shape_cast %306 : vector<1x1x4x4xf32> to vector<4x4xf32>
    %308 = vector.broadcast %305 : f32 to vector<4x4xf32>
    %309 = arith.mulf %308, %307 : vector<4x4xf32>
    %310 = arith.addf %304, %309 : vector<4x4xf32>
    %c50 = arith.constant 50 : index
    %311 = memref.load %arg1[%c50] : memref<81xf32, #tpu.memory_space<smem>>
    %c0_207 = arith.constant 0 : index
    %c2_208 = arith.constant 2 : index
    %c1_209 = arith.constant 1 : index
    %c2_210 = arith.constant 2 : index
    %312 = vector.load %arg0[%c0_207, %c2_208, %c1_209, %c2_210] : memref<1x3x6x6xf32, #tpu.memory_space<vmem>>, vector<1x1x4x4xf32>
    %313 = vector.shape_cast %312 : vector<1x1x4x4xf32> to vector<4x4xf32>
    %314 = vector.broadcast %311 : f32 to vector<4x4xf32>
    %315 = arith.mulf %314, %313 : vector<4x4xf32>
    %316 = arith.addf %310, %315 : vector<4x4xf32>
    %c51 = arith.constant 51 : index
    %317 = memref.load %arg1[%c51] : memref<81xf32, #tpu.memory_space<smem>>
    %c0_211 = arith.constant 0 : index
    %c2_212 = arith.constant 2 : index
    %c2_213 = arith.constant 2 : index
    %c0_214 = arith.constant 0 : index
    %318 = vector.load %arg0[%c0_211, %c2_212, %c2_213, %c0_214] : memref<1x3x6x6xf32, #tpu.memory_space<vmem>>, vector<1x1x4x4xf32>
    %319 = vector.shape_cast %318 : vector<1x1x4x4xf32> to vector<4x4xf32>
    %320 = vector.broadcast %317 : f32 to vector<4x4xf32>
    %321 = arith.mulf %320, %319 : vector<4x4xf32>
    %322 = arith.addf %316, %321 : vector<4x4xf32>
    %c52 = arith.constant 52 : index
    %323 = memref.load %arg1[%c52] : memref<81xf32, #tpu.memory_space<smem>>
    %c0_215 = arith.constant 0 : index
    %c2_216 = arith.constant 2 : index
    %c2_217 = arith.constant 2 : index
    %c1_218 = arith.constant 1 : index
    %324 = vector.load %arg0[%c0_215, %c2_216, %c2_217, %c1_218] : memref<1x3x6x6xf32, #tpu.memory_space<vmem>>, vector<1x1x4x4xf32>
    %325 = vector.shape_cast %324 : vector<1x1x4x4xf32> to vector<4x4xf32>
    %326 = vector.broadcast %323 : f32 to vector<4x4xf32>
    %327 = arith.mulf %326, %325 : vector<4x4xf32>
    %328 = arith.addf %322, %327 : vector<4x4xf32>
    %c53 = arith.constant 53 : index
    %329 = memref.load %arg1[%c53] : memref<81xf32, #tpu.memory_space<smem>>
    %c0_219 = arith.constant 0 : index
    %c2_220 = arith.constant 2 : index
    %c2_221 = arith.constant 2 : index
    %c2_222 = arith.constant 2 : index
    %330 = vector.load %arg0[%c0_219, %c2_220, %c2_221, %c2_222] : memref<1x3x6x6xf32, #tpu.memory_space<vmem>>, vector<1x1x4x4xf32>
    %331 = vector.shape_cast %330 : vector<1x1x4x4xf32> to vector<4x4xf32>
    %332 = vector.broadcast %329 : f32 to vector<4x4xf32>
    %333 = arith.mulf %332, %331 : vector<4x4xf32>
    %334 = arith.addf %328, %333 : vector<4x4xf32>
    %c0_223 = arith.constant 0 : index
    %c1_224 = arith.constant 1 : index
    %c0_225 = arith.constant 0 : index
    %c0_226 = arith.constant 0 : index
    %335 = vector.load %arg3[%c0_223, %c1_224, %c0_225, %c0_226] : memref<1x3x4x4xf32, #tpu.memory_space<vmem>>, vector<1x1x4x4xf32>
    %336 = vector.shape_cast %335 : vector<1x1x4x4xf32> to vector<4x4xf32>
    %337 = vector.shape_cast %334 : vector<4x4xf32> to vector<1x1x4x4xf32>
    tpu.vector_store %arg3[%c0_223, %c1_224, %c0_225, %c0_226], %337 {strides = array<i32>} : memref<1x3x4x4xf32, #tpu.memory_space<vmem>>, vector<1x1x4x4xf32>,
    %cst_227 = arith.constant 0.000000e+00 : f32
    %338 = vector.broadcast %cst_227 : f32 to vector<4x4xf32>
    %c2_228 = arith.constant 2 : index
    %339 = memref.load %arg2[%c2_228] : memref<3xf32, #tpu.memory_space<smem>>
    %340 = vector.broadcast %339 : f32 to vector<4x4xf32>
    %341 = arith.addf %338, %340 : vector<4x4xf32>
    %c54 = arith.constant 54 : index
    %342 = memref.load %arg1[%c54] : memref<81xf32, #tpu.memory_space<smem>>
    %c0_229 = arith.constant 0 : index
    %c0_230 = arith.constant 0 : index
    %c0_231 = arith.constant 0 : index
    %c0_232 = arith.constant 0 : index
    %343 = vector.load %arg0[%c0_229, %c0_230, %c0_231, %c0_232] : memref<1x3x6x6xf32, #tpu.memory_space<vmem>>, vector<1x1x4x4xf32>
    %344 = vector.shape_cast %343 : vector<1x1x4x4xf32> to vector<4x4xf32>
    %345 = vector.broadcast %342 : f32 to vector<4x4xf32>
    %346 = arith.mulf %345, %344 : vector<4x4xf32>
    %347 = arith.addf %341, %346 : vector<4x4xf32>
    %c55 = arith.constant 55 : index
    %348 = memref.load %arg1[%c55] : memref<81xf32, #tpu.memory_space<smem>>
    %c0_233 = arith.constant 0 : index
    %c0_234 = arith.constant 0 : index
    %c0_235 = arith.constant 0 : index
    %c1_236 = arith.constant 1 : index
    %349 = vector.load %arg0[%c0_233, %c0_234, %c0_235, %c1_236] : memref<1x3x6x6xf32, #tpu.memory_space<vmem>>, vector<1x1x4x4xf32>
    %350 = vector.shape_cast %349 : vector<1x1x4x4xf32> to vector<4x4xf32>
    %351 = vector.broadcast %348 : f32 to vector<4x4xf32>
    %352 = arith.mulf %351, %350 : vector<4x4xf32>
    %353 = arith.addf %347, %352 : vector<4x4xf32>
    %c56 = arith.constant 56 : index
    %354 = memref.load %arg1[%c56] : memref<81xf32, #tpu.memory_space<smem>>
    %c0_237 = arith.constant 0 : index
    %c0_238 = arith.constant 0 : index
    %c0_239 = arith.constant 0 : index
    %c2_240 = arith.constant 2 : index
    %355 = vector.load %arg0[%c0_237, %c0_238, %c0_239, %c2_240] : memref<1x3x6x6xf32, #tpu.memory_space<vmem>>, vector<1x1x4x4xf32>
    %356 = vector.shape_cast %355 : vector<1x1x4x4xf32> to vector<4x4xf32>
    %357 = vector.broadcast %354 : f32 to vector<4x4xf32>
    %358 = arith.mulf %357, %356 : vector<4x4xf32>
    %359 = arith.addf %353, %358 : vector<4x4xf32>
    %c57 = arith.constant 57 : index
    %360 = memref.load %arg1[%c57] : memref<81xf32, #tpu.memory_space<smem>>
    %c0_241 = arith.constant 0 : index
    %c0_242 = arith.constant 0 : index
    %c1_243 = arith.constant 1 : index
    %c0_244 = arith.constant 0 : index
    %361 = vector.load %arg0[%c0_241, %c0_242, %c1_243, %c0_244] : memref<1x3x6x6xf32, #tpu.memory_space<vmem>>, vector<1x1x4x4xf32>
    %362 = vector.shape_cast %361 : vector<1x1x4x4xf32> to vector<4x4xf32>
    %363 = vector.broadcast %360 : f32 to vector<4x4xf32>
    %364 = arith.mulf %363, %362 : vector<4x4xf32>
    %365 = arith.addf %359, %364 : vector<4x4xf32>
    %c58 = arith.constant 58 : index
    %366 = memref.load %arg1[%c58] : memref<81xf32, #tpu.memory_space<smem>>
    %c0_245 = arith.constant 0 : index
    %c0_246 = arith.constant 0 : index
    %c1_247 = arith.constant 1 : index
    %c1_248 = arith.constant 1 : index
    %367 = vector.load %arg0[%c0_245, %c0_246, %c1_247, %c1_248] : memref<1x3x6x6xf32, #tpu.memory_space<vmem>>, vector<1x1x4x4xf32>
    %368 = vector.shape_cast %367 : vector<1x1x4x4xf32> to vector<4x4xf32>
    %369 = vector.broadcast %366 : f32 to vector<4x4xf32>
    %370 = arith.mulf %369, %368 : vector<4x4xf32>
    %371 = arith.addf %365, %370 : vector<4x4xf32>
    %c59 = arith.constant 59 : index
    %372 = memref.load %arg1[%c59] : memref<81xf32, #tpu.memory_space<smem>>
    %c0_249 = arith.constant 0 : index
    %c0_250 = arith.constant 0 : index
    %c1_251 = arith.constant 1 : index
    %c2_252 = arith.constant 2 : index
    %373 = vector.load %arg0[%c0_249, %c0_250, %c1_251, %c2_252] : memref<1x3x6x6xf32, #tpu.memory_space<vmem>>, vector<1x1x4x4xf32>
    %374 = vector.shape_cast %373 : vector<1x1x4x4xf32> to vector<4x4xf32>
    %375 = vector.broadcast %372 : f32 to vector<4x4xf32>
    %376 = arith.mulf %375, %374 : vector<4x4xf32>
    %377 = arith.addf %371, %376 : vector<4x4xf32>
    %c60 = arith.constant 60 : index
    %378 = memref.load %arg1[%c60] : memref<81xf32, #tpu.memory_space<smem>>
    %c0_253 = arith.constant 0 : index
    %c0_254 = arith.constant 0 : index
    %c2_255 = arith.constant 2 : index
    %c0_256 = arith.constant 0 : index
    %379 = vector.load %arg0[%c0_253, %c0_254, %c2_255, %c0_256] : memref<1x3x6x6xf32, #tpu.memory_space<vmem>>, vector<1x1x4x4xf32>
    %380 = vector.shape_cast %379 : vector<1x1x4x4xf32> to vector<4x4xf32>
    %381 = vector.broadcast %378 : f32 to vector<4x4xf32>
    %382 = arith.mulf %381, %380 : vector<4x4xf32>
    %383 = arith.addf %377, %382 : vector<4x4xf32>
    %c61 = arith.constant 61 : index
    %384 = memref.load %arg1[%c61] : memref<81xf32, #tpu.memory_space<smem>>
    %c0_257 = arith.constant 0 : index
    %c0_258 = arith.constant 0 : index
    %c2_259 = arith.constant 2 : index
    %c1_260 = arith.constant 1 : index
    %385 = vector.load %arg0[%c0_257, %c0_258, %c2_259, %c1_260] : memref<1x3x6x6xf32, #tpu.memory_space<vmem>>, vector<1x1x4x4xf32>
    %386 = vector.shape_cast %385 : vector<1x1x4x4xf32> to vector<4x4xf32>
    %387 = vector.broadcast %384 : f32 to vector<4x4xf32>
    %388 = arith.mulf %387, %386 : vector<4x4xf32>
    %389 = arith.addf %383, %388 : vector<4x4xf32>
    %c62 = arith.constant 62 : index
    %390 = memref.load %arg1[%c62] : memref<81xf32, #tpu.memory_space<smem>>
    %c0_261 = arith.constant 0 : index
    %c0_262 = arith.constant 0 : index
    %c2_263 = arith.constant 2 : index
    %c2_264 = arith.constant 2 : index
    %391 = vector.load %arg0[%c0_261, %c0_262, %c2_263, %c2_264] : memref<1x3x6x6xf32, #tpu.memory_space<vmem>>, vector<1x1x4x4xf32>
    %392 = vector.shape_cast %391 : vector<1x1x4x4xf32> to vector<4x4xf32>
    %393 = vector.broadcast %390 : f32 to vector<4x4xf32>
    %394 = arith.mulf %393, %392 : vector<4x4xf32>
    %395 = arith.addf %389, %394 : vector<4x4xf32>
    %c63 = arith.constant 63 : index
    %396 = memref.load %arg1[%c63] : memref<81xf32, #tpu.memory_space<smem>>
    %c0_265 = arith.constant 0 : index
    %c1_266 = arith.constant 1 : index
    %c0_267 = arith.constant 0 : index
    %c0_268 = arith.constant 0 : index
    %397 = vector.load %arg0[%c0_265, %c1_266, %c0_267, %c0_268] : memref<1x3x6x6xf32, #tpu.memory_space<vmem>>, vector<1x1x4x4xf32>
    %398 = vector.shape_cast %397 : vector<1x1x4x4xf32> to vector<4x4xf32>
    %399 = vector.broadcast %396 : f32 to vector<4x4xf32>
    %400 = arith.mulf %399, %398 : vector<4x4xf32>
    %401 = arith.addf %395, %400 : vector<4x4xf32>
    %c64 = arith.constant 64 : index
    %402 = memref.load %arg1[%c64] : memref<81xf32, #tpu.memory_space<smem>>
    %c0_269 = arith.constant 0 : index
    %c1_270 = arith.constant 1 : index
    %c0_271 = arith.constant 0 : index
    %c1_272 = arith.constant 1 : index
    %403 = vector.load %arg0[%c0_269, %c1_270, %c0_271, %c1_272] : memref<1x3x6x6xf32, #tpu.memory_space<vmem>>, vector<1x1x4x4xf32>
    %404 = vector.shape_cast %403 : vector<1x1x4x4xf32> to vector<4x4xf32>
    %405 = vector.broadcast %402 : f32 to vector<4x4xf32>
    %406 = arith.mulf %405, %404 : vector<4x4xf32>
    %407 = arith.addf %401, %406 : vector<4x4xf32>
    %c65 = arith.constant 65 : index
    %408 = memref.load %arg1[%c65] : memref<81xf32, #tpu.memory_space<smem>>
    %c0_273 = arith.constant 0 : index
    %c1_274 = arith.constant 1 : index
    %c0_275 = arith.constant 0 : index
    %c2_276 = arith.constant 2 : index
    %409 = vector.load %arg0[%c0_273, %c1_274, %c0_275, %c2_276] : memref<1x3x6x6xf32, #tpu.memory_space<vmem>>, vector<1x1x4x4xf32>
    %410 = vector.shape_cast %409 : vector<1x1x4x4xf32> to vector<4x4xf32>
    %411 = vector.broadcast %408 : f32 to vector<4x4xf32>
    %412 = arith.mulf %411, %410 : vector<4x4xf32>
    %413 = arith.addf %407, %412 : vector<4x4xf32>
    %c66 = arith.constant 66 : index
    %414 = memref.load %arg1[%c66] : memref<81xf32, #tpu.memory_space<smem>>
    %c0_277 = arith.constant 0 : index
    %c1_278 = arith.constant 1 : index
    %c1_279 = arith.constant 1 : index
    %c0_280 = arith.constant 0 : index
    %415 = vector.load %arg0[%c0_277, %c1_278, %c1_279, %c0_280] : memref<1x3x6x6xf32, #tpu.memory_space<vmem>>, vector<1x1x4x4xf32>
    %416 = vector.shape_cast %415 : vector<1x1x4x4xf32> to vector<4x4xf32>
    %417 = vector.broadcast %414 : f32 to vector<4x4xf32>
    %418 = arith.mulf %417, %416 : vector<4x4xf32>
    %419 = arith.addf %413, %418 : vector<4x4xf32>
    %c67 = arith.constant 67 : index
    %420 = memref.load %arg1[%c67] : memref<81xf32, #tpu.memory_space<smem>>
    %c0_281 = arith.constant 0 : index
    %c1_282 = arith.constant 1 : index
    %c1_283 = arith.constant 1 : index
    %c1_284 = arith.constant 1 : index
    %421 = vector.load %arg0[%c0_281, %c1_282, %c1_283, %c1_284] : memref<1x3x6x6xf32, #tpu.memory_space<vmem>>, vector<1x1x4x4xf32>
    %422 = vector.shape_cast %421 : vector<1x1x4x4xf32> to vector<4x4xf32>
    %423 = vector.broadcast %420 : f32 to vector<4x4xf32>
    %424 = arith.mulf %423, %422 : vector<4x4xf32>
    %425 = arith.addf %419, %424 : vector<4x4xf32>
    %c68 = arith.constant 68 : index
    %426 = memref.load %arg1[%c68] : memref<81xf32, #tpu.memory_space<smem>>
    %c0_285 = arith.constant 0 : index
    %c1_286 = arith.constant 1 : index
    %c1_287 = arith.constant 1 : index
    %c2_288 = arith.constant 2 : index
    %427 = vector.load %arg0[%c0_285, %c1_286, %c1_287, %c2_288] : memref<1x3x6x6xf32, #tpu.memory_space<vmem>>, vector<1x1x4x4xf32>
    %428 = vector.shape_cast %427 : vector<1x1x4x4xf32> to vector<4x4xf32>
    %429 = vector.broadcast %426 : f32 to vector<4x4xf32>
    %430 = arith.mulf %429, %428 : vector<4x4xf32>
    %431 = arith.addf %425, %430 : vector<4x4xf32>
    %c69 = arith.constant 69 : index
    %432 = memref.load %arg1[%c69] : memref<81xf32, #tpu.memory_space<smem>>
    %c0_289 = arith.constant 0 : index
    %c1_290 = arith.constant 1 : index
    %c2_291 = arith.constant 2 : index
    %c0_292 = arith.constant 0 : index
    %433 = vector.load %arg0[%c0_289, %c1_290, %c2_291, %c0_292] : memref<1x3x6x6xf32, #tpu.memory_space<vmem>>, vector<1x1x4x4xf32>
    %434 = vector.shape_cast %433 : vector<1x1x4x4xf32> to vector<4x4xf32>
    %435 = vector.broadcast %432 : f32 to vector<4x4xf32>
    %436 = arith.mulf %435, %434 : vector<4x4xf32>
    %437 = arith.addf %431, %436 : vector<4x4xf32>
    %c70 = arith.constant 70 : index
    %438 = memref.load %arg1[%c70] : memref<81xf32, #tpu.memory_space<smem>>
    %c0_293 = arith.constant 0 : index
    %c1_294 = arith.constant 1 : index
    %c2_295 = arith.constant 2 : index
    %c1_296 = arith.constant 1 : index
    %439 = vector.load %arg0[%c0_293, %c1_294, %c2_295, %c1_296] : memref<1x3x6x6xf32, #tpu.memory_space<vmem>>, vector<1x1x4x4xf32>
    %440 = vector.shape_cast %439 : vector<1x1x4x4xf32> to vector<4x4xf32>
    %441 = vector.broadcast %438 : f32 to vector<4x4xf32>
    %442 = arith.mulf %441, %440 : vector<4x4xf32>
    %443 = arith.addf %437, %442 : vector<4x4xf32>
    %c71 = arith.constant 71 : index
    %444 = memref.load %arg1[%c71] : memref<81xf32, #tpu.memory_space<smem>>
    %c0_297 = arith.constant 0 : index
    %c1_298 = arith.constant 1 : index
    %c2_299 = arith.constant 2 : index
    %c2_300 = arith.constant 2 : index
    %445 = vector.load %arg0[%c0_297, %c1_298, %c2_299, %c2_300] : memref<1x3x6x6xf32, #tpu.memory_space<vmem>>, vector<1x1x4x4xf32>
    %446 = vector.shape_cast %445 : vector<1x1x4x4xf32> to vector<4x4xf32>
    %447 = vector.broadcast %444 : f32 to vector<4x4xf32>
    %448 = arith.mulf %447, %446 : vector<4x4xf32>
    %449 = arith.addf %443, %448 : vector<4x4xf32>
    %c72 = arith.constant 72 : index
    %450 = memref.load %arg1[%c72] : memref<81xf32, #tpu.memory_space<smem>>
    %c0_301 = arith.constant 0 : index
    %c2_302 = arith.constant 2 : index
    %c0_303 = arith.constant 0 : index
    %c0_304 = arith.constant 0 : index
    %451 = vector.load %arg0[%c0_301, %c2_302, %c0_303, %c0_304] : memref<1x3x6x6xf32, #tpu.memory_space<vmem>>, vector<1x1x4x4xf32>
    %452 = vector.shape_cast %451 : vector<1x1x4x4xf32> to vector<4x4xf32>
    %453 = vector.broadcast %450 : f32 to vector<4x4xf32>
    %454 = arith.mulf %453, %452 : vector<4x4xf32>
    %455 = arith.addf %449, %454 : vector<4x4xf32>
    %c73 = arith.constant 73 : index
    %456 = memref.load %arg1[%c73] : memref<81xf32, #tpu.memory_space<smem>>
    %c0_305 = arith.constant 0 : index
    %c2_306 = arith.constant 2 : index
    %c0_307 = arith.constant 0 : index
    %c1_308 = arith.constant 1 : index
    %457 = vector.load %arg0[%c0_305, %c2_306, %c0_307, %c1_308] : memref<1x3x6x6xf32, #tpu.memory_space<vmem>>, vector<1x1x4x4xf32>
    %458 = vector.shape_cast %457 : vector<1x1x4x4xf32> to vector<4x4xf32>
    %459 = vector.broadcast %456 : f32 to vector<4x4xf32>
    %460 = arith.mulf %459, %458 : vector<4x4xf32>
    %461 = arith.addf %455, %460 : vector<4x4xf32>
    %c74 = arith.constant 74 : index
    %462 = memref.load %arg1[%c74] : memref<81xf32, #tpu.memory_space<smem>>
    %c0_309 = arith.constant 0 : index
    %c2_310 = arith.constant 2 : index
    %c0_311 = arith.constant 0 : index
    %c2_312 = arith.constant 2 : index
    %463 = vector.load %arg0[%c0_309, %c2_310, %c0_311, %c2_312] : memref<1x3x6x6xf32, #tpu.memory_space<vmem>>, vector<1x1x4x4xf32>
    %464 = vector.shape_cast %463 : vector<1x1x4x4xf32> to vector<4x4xf32>
    %465 = vector.broadcast %462 : f32 to vector<4x4xf32>
    %466 = arith.mulf %465, %464 : vector<4x4xf32>
    %467 = arith.addf %461, %466 : vector<4x4xf32>
    %c75 = arith.constant 75 : index
    %468 = memref.load %arg1[%c75] : memref<81xf32, #tpu.memory_space<smem>>
    %c0_313 = arith.constant 0 : index
    %c2_314 = arith.constant 2 : index
    %c1_315 = arith.constant 1 : index
    %c0_316 = arith.constant 0 : index
    %469 = vector.load %arg0[%c0_313, %c2_314, %c1_315, %c0_316] : memref<1x3x6x6xf32, #tpu.memory_space<vmem>>, vector<1x1x4x4xf32>
    %470 = vector.shape_cast %469 : vector<1x1x4x4xf32> to vector<4x4xf32>
    %471 = vector.broadcast %468 : f32 to vector<4x4xf32>
    %472 = arith.mulf %471, %470 : vector<4x4xf32>
    %473 = arith.addf %467, %472 : vector<4x4xf32>
    %c76 = arith.constant 76 : index
    %474 = memref.load %arg1[%c76] : memref<81xf32, #tpu.memory_space<smem>>
    %c0_317 = arith.constant 0 : index
    %c2_318 = arith.constant 2 : index
    %c1_319 = arith.constant 1 : index
    %c1_320 = arith.constant 1 : index
    %475 = vector.load %arg0[%c0_317, %c2_318, %c1_319, %c1_320] : memref<1x3x6x6xf32, #tpu.memory_space<vmem>>, vector<1x1x4x4xf32>
    %476 = vector.shape_cast %475 : vector<1x1x4x4xf32> to vector<4x4xf32>
    %477 = vector.broadcast %474 : f32 to vector<4x4xf32>
    %478 = arith.mulf %477, %476 : vector<4x4xf32>
    %479 = arith.addf %473, %478 : vector<4x4xf32>
    %c77 = arith.constant 77 : index
    %480 = memref.load %arg1[%c77] : memref<81xf32, #tpu.memory_space<smem>>
    %c0_321 = arith.constant 0 : index
    %c2_322 = arith.constant 2 : index
    %c1_323 = arith.constant 1 : index
    %c2_324 = arith.constant 2 : index
    %481 = vector.load %arg0[%c0_321, %c2_322, %c1_323, %c2_324] : memref<1x3x6x6xf32, #tpu.memory_space<vmem>>, vector<1x1x4x4xf32>
    %482 = vector.shape_cast %481 : vector<1x1x4x4xf32> to vector<4x4xf32>
    %483 = vector.broadcast %480 : f32 to vector<4x4xf32>
    %484 = arith.mulf %483, %482 : vector<4x4xf32>
    %485 = arith.addf %479, %484 : vector<4x4xf32>
    %c78 = arith.constant 78 : index
    %486 = memref.load %arg1[%c78] : memref<81xf32, #tpu.memory_space<smem>>
    %c0_325 = arith.constant 0 : index
    %c2_326 = arith.constant 2 : index
    %c2_327 = arith.constant 2 : index
    %c0_328 = arith.constant 0 : index
    %487 = vector.load %arg0[%c0_325, %c2_326, %c2_327, %c0_328] : memref<1x3x6x6xf32, #tpu.memory_space<vmem>>, vector<1x1x4x4xf32>
    %488 = vector.shape_cast %487 : vector<1x1x4x4xf32> to vector<4x4xf32>
    %489 = vector.broadcast %486 : f32 to vector<4x4xf32>
    %490 = arith.mulf %489, %488 : vector<4x4xf32>
    %491 = arith.addf %485, %490 : vector<4x4xf32>
    %c79 = arith.constant 79 : index
    %492 = memref.load %arg1[%c79] : memref<81xf32, #tpu.memory_space<smem>>
    %c0_329 = arith.constant 0 : index
    %c2_330 = arith.constant 2 : index
    %c2_331 = arith.constant 2 : index
    %c1_332 = arith.constant 1 : index
    %493 = vector.load %arg0[%c0_329, %c2_330, %c2_331, %c1_332] : memref<1x3x6x6xf32, #tpu.memory_space<vmem>>, vector<1x1x4x4xf32>
    %494 = vector.shape_cast %493 : vector<1x1x4x4xf32> to vector<4x4xf32>
    %495 = vector.broadcast %492 : f32 to vector<4x4xf32>
    %496 = arith.mulf %495, %494 : vector<4x4xf32>
    %497 = arith.addf %491, %496 : vector<4x4xf32>
    %c80 = arith.constant 80 : index
    %498 = memref.load %arg1[%c80] : memref<81xf32, #tpu.memory_space<smem>>
    %c0_333 = arith.constant 0 : index
    %c2_334 = arith.constant 2 : index
    %c2_335 = arith.constant 2 : index
    %c2_336 = arith.constant 2 : index
    %499 = vector.load %arg0[%c0_333, %c2_334, %c2_335, %c2_336] : memref<1x3x6x6xf32, #tpu.memory_space<vmem>>, vector<1x1x4x4xf32>
    %500 = vector.shape_cast %499 : vector<1x1x4x4xf32> to vector<4x4xf32>
    %501 = vector.broadcast %498 : f32 to vector<4x4xf32>
    %502 = arith.mulf %501, %500 : vector<4x4xf32>
    %503 = arith.addf %497, %502 : vector<4x4xf32>
    %c0_337 = arith.constant 0 : index
    %c2_338 = arith.constant 2 : index
    %c0_339 = arith.constant 0 : index
    %c0_340 = arith.constant 0 : index
    %504 = vector.load %arg3[%c0_337, %c2_338, %c0_339, %c0_340] : memref<1x3x4x4xf32, #tpu.memory_space<vmem>>, vector<1x1x4x4xf32>
    %505 = vector.shape_cast %504 : vector<1x1x4x4xf32> to vector<4x4xf32>
    %506 = vector.shape_cast %503 : vector<4x4xf32> to vector<1x1x4x4xf32>
    tpu.vector_store %arg3[%c0_337, %c2_338, %c0_339, %c0_340], %506 {strides = array<i32>} : memref<1x3x4x4xf32, #tpu.memory_space<vmem>>, vector<1x1x4x4xf32>,
    return
  }
}

</mosaic_0001>

<llo_original>
// kernel: model_forward.1
$region0: #{model_forward.1}
  #allocation0 [shape = 'u32[]', space=smem, size = 0x4, offset = 0x4, fixed_abs, tag = 'smem constant byte address 0x4 - core index']
  #allocation1 [shape = 'u32[144,128]{1,0:T(1,128)}', space=vmem, size = 0x12000, scoped, tag = 'internal scratch']
  %s0 = inlined_call_operand.vmem [shape: f32[1,3,6,6], index: 0, kind: input, shape index: {}]
  %s1 = inlined_call_operand.vmem [shape: f32[81], index: 1, kind: input, shape index: {}]
  %s2 = inlined_call_operand.vmem [shape: f32[3], index: 2, kind: input, shape index: {}]
  %s3 = inlined_call_operand.hbm [shape: f32[1,3,4,4], index: 3, kind: output, shape index: {}]
  %s4 = sld [smem:[#allocation0]]
  $region30: #{model_forward.1} parent=0
    _
  %s6 = ssub.s32 1, %s4
  %s7 = scalar_select 0, %s6, %s4
  $region1: #{model_forward.1} parent=0
    #allocation2 [shape = 'u8[512]{0}', space=smem, size = 0x200, scoped, tag = 'input window, operand 1, single buffered']
    #allocation3 [shape = 's32[1]{0}', space=sflag, size = 0x4, scoped, tag = 'scoped memory for model_forward.1']
    #allocation4 [shape = 's32[1]{0}', space=sflag, size = 0x4, scoped, tag = 'scoped memory for model_forward.1']
    #allocation5 [shape = 'u8[512]{0}', space=smem, size = 0x200, scoped, tag = 'input window, operand 2, single buffered']
    #allocation6 [shape = 's32[1]{0}', space=sflag, size = 0x4, scoped, tag = 'scoped memory for model_forward.1']
    #allocation7 [shape = 'u8[6144]{0}', space=vmem, size = 0x1800, scoped, tag = 'output window, operand 0, single buffered']
    %8 = vsyncpa [#allocation4], 0
    %9 = vsyncpa [#allocation6], 0
    %10 = vsyncpa [#allocation3], 0
    // Predicated region
    $region2: #{model_forward.1} parent=1 // pred_check
      _
    $region3: #{model_forward.1} parent=1 // pred_check_branch
      %12 = sbr.rel (0) target = $region5
    $region4: #{model_forward.1} parent=1 // pred_region
      _
    $region5: #{model_forward.1} parent=1 // pred_fallthru
      _
    // Predicated region
    $region6: #{model_forward.1} parent=1 // pred_check
      _
    $region7: #{model_forward.1} parent=1 // pred_check_branch
      %14 = sbr.rel (0) target = $region9
    $region8: #{model_forward.1} parent=1 // pred_region
      %s16 = ssub.s32 16, 16
      %17 = vsyncadd [#allocation4], %s16
      %s19 = sshll.u32 %s1, 4
      %s20 = int_to_ptr.vmem [resolvable:$true] %s19
      %22 = dma.vmem_to_smem %s20, 16, [#allocation2], [#allocation4]
    $region9: #{model_forward.1} parent=1 // pred_fallthru
      _
    // Predicated region
    $region10: #{model_forward.1} parent=1 // pred_check
      _
    $region11: #{model_forward.1} parent=1 // pred_check_branch
      %24 = sbr.rel (0) target = $region13
    $region12: #{model_forward.1} parent=1 // pred_region
      %s26 = ssub.s32 16, 16
      %27 = vsyncadd [#allocation6], %s26
      %s29 = sshll.u32 %s2, 4
      %s30 = int_to_ptr.vmem [resolvable:$true] %s29
      %32 = dma.vmem_to_smem %s30, 16, [#allocation5], [#allocation6]
    $region13: #{model_forward.1} parent=1 // pred_fallthru
      _
    // Predicated region
    $region14: #{model_forward.1} parent=1 // pred_check
      _
    $region15: #{model_forward.1} parent=1 // pred_check_branch
      %34 = sbr.rel (0) target = $region17
    $region16: #{model_forward.1} parent=1 // pred_region
      %35 = dma.done [#allocation4], 16
    $region17: #{model_forward.1} parent=1 // pred_fallthru
      _
    // Predicated region
    $region18: #{model_forward.1} parent=1 // pred_check
      _
    $region19: #{model_forward.1} parent=1 // pred_check_branch
      %37 = sbr.rel (0) target = $region21
    $region20: #{model_forward.1} parent=1 // pred_region
      %38 = dma.done [#allocation6], 16
    $region21: #{model_forward.1} parent=1 // pred_fallthru
      _
    %39 = sfence
    %s40 = sld [smem:[#allocation5]]
    %v41 = vstv %s40
    %v42 = vadd.f32 %v41, 0.0
    %s43 = sld [smem:[#allocation2]]
    %v44 = vld [vmem:[%s0] sm:$0xf]
    %v45 = vstv %s43
    %v46 = vmul.f32 %v45, %v44
    %v47 = vadd.f32 %v42, %v46
    %s48 = sld [smem:[#allocation2 + $0x1]]
    %v49 = vstv %s48
    %v50 = vmul.f32 %v49, %v44
    %52 = vrot.lane.b32.xlu0 %v50, 127
    %v53 = vpop.permute.xlu0 %52
    %v55 = vadd.f32 %v47, %v53
    %s56 = sld [smem:[#allocation2 + $0x2]]
    %v57 = vstv %s56
    %v58 = vmul.f32 %v57, %v44
    %60 = vrot.lane.b32.xlu0 %v58, 126
    %v61 = vpop.permute.xlu0 %60
    %v63 = vadd.f32 %v55, %v61
    %s64 = sld [smem:[#allocation2 + $0x3]]
    %v65 = vld [vmem:[%s0 + $0x1] sm:$0xf]
    %v66 = vstv %s64
    %v67 = vmul.f32 %v66, %v65
    %v68 = vadd.f32 %v63, %v67
    %s69 = sld [smem:[#allocation2 + $0x4]]
    %v70 = vstv %s69
    %v71 = vmul.f32 %v70, %v65
    %73 = vrot.lane.b32.xlu0 %v71, 127
    %v74 = vpop.permute.xlu0 %73
    %v76 = vadd.f32 %v68, %v74
    %s77 = sld [smem:[#allocation2 + $0x5]]
    %v78 = vstv %s77
    %v79 = vmul.f32 %v78, %v65
    %81 = vrot.lane.b32.xlu0 %v79, 126
    %v82 = vpop.permute.xlu0 %81
    %v84 = vadd.f32 %v76, %v82
    %s85 = sld [smem:[#allocation2 + $0x6]]
    %v86 = vld [vmem:[%s0 + $0x2] sm:$0xf]
    %v87 = vstv %s85
    %v88 = vmul.f32 %v87, %v86
    %v89 = vadd.f32 %v84, %v88
    %s90 = sld [smem:[#allocation2 + $0x7]]
    %v91 = vstv %s90
    %v92 = vmul.f32 %v91, %v86
    %94 = vrot.lane.b32.xlu0 %v92, 127
    %v95 = vpop.permute.xlu0 %94
    %v97 = vadd.f32 %v89, %v95
    %s98 = sld [smem:[#allocation2 + $0x8]]
    %v99 = vstv %s98
    %v100 = vmul.f32 %v99, %v86
    %102 = vrot.lane.b32.xlu0 %v100, 126
    %v103 = vpop.permute.xlu0 %102
    %v105 = vadd.f32 %v97, %v103
    %s106 = sld [smem:[#allocation2 + $0x9]]
    %s107 = scalar_lea.vmem %s0, 8
    %v108 = vld [vmem:[%s107] sm:$0xf]
    %v109 = vstv %s106
    %v110 = vmul.f32 %v109, %v108
    %v111 = vadd.f32 %v105, %v110
    %s112 = sld [smem:[#allocation2 + $0xa]]
    %v113 = vstv %s112
    %v114 = vmul.f32 %v113, %v108
    %116 = vrot.lane.b32.xlu0 %v114, 127
    %v117 = vpop.permute.xlu0 %116
    %v119 = vadd.f32 %v111, %v117
    %s120 = sld [smem:[#allocation2 + $0xb]]
    %v121 = vstv %s120
    %v122 = vmul.f32 %v121, %v108
    %124 = vrot.lane.b32.xlu0 %v122, 126
    %v125 = vpop.permute.xlu0 %124
    %v127 = vadd.f32 %v119, %v125
    %s128 = sld [smem:[#allocation2 + $0xc]]
    %v129 = vld [vmem:[%s107 + $0x1] sm:$0xf]
    %v130 = vstv %s128
    %v131 = vmul.f32 %v130, %v129
    %v132 = vadd.f32 %v127, %v131
    %s133 = sld [smem:[#allocation2 + $0xd]]
    %v134 = vstv %s133
    %v135 = vmul.f32 %v134, %v129
    %137 = vrot.lane.b32.xlu0 %v135, 127
    %v138 = vpop.permute.xlu0 %137
    %v140 = vadd.f32 %v132, %v138
    %s141 = sld [smem:[#allocation2 + $0xe]]
    %v142 = vstv %s141
    %v143 = vmul.f32 %v142, %v129
    %145 = vrot.lane.b32.xlu0 %v143, 126
    %v146 = vpop.permute.xlu0 %145
    %v148 = vadd.f32 %v140, %v146
    %s149 = sld [smem:[#allocation2 + $0xf]]
    %v150 = vld [vmem:[%s107 + $0x2] sm:$0xf]
    %v151 = vstv %s149
    %v152 = vmul.f32 %v151, %v150
    %v153 = vadd.f32 %v148, %v152
    %s154 = sld [smem:[#allocation2 + $0x10]]
    %v155 = vstv %s154
    %v156 = vmul.f32 %v155, %v150
    %158 = vrot.lane.b32.xlu0 %v156, 127
    %v159 = vpop.permute.xlu0 %158
    %v161 = vadd.f32 %v153, %v159
    %s162 = sld [smem:[#allocation2 + $0x11]]
    %v163 = vstv %s162
    %v164 = vmul.f32 %v163, %v150
    %166 = vrot.lane.b32.xlu0 %v164, 126
    %v167 = vpop.permute.xlu0 %166
    %v169 = vadd.f32 %v161, %v167
    %s170 = sld [smem:[#allocation2 + $0x12]]
    %s171 = scalar_lea.vmem %s0, 16
    %v172 = vld [vmem:[%s171] sm:$0xf]
    %v173 = vstv %s170
    %v174 = vmul.f32 %v173, %v172
    %v175 = vadd.f32 %v169, %v174
    %s176 = sld [smem:[#allocation2 + $0x13]]
    %v177 = vstv %s176
    %v178 = vmul.f32 %v177, %v172
    %180 = vrot.lane.b32.xlu0 %v178, 127
    %v181 = vpop.permute.xlu0 %180
    %v183 = vadd.f32 %v175, %v181
    %s184 = sld [smem:[#allocation2 + $0x14]]
    %v185 = vstv %s184
    %v186 = vmul.f32 %v185, %v172
    %188 = vrot.lane.b32.xlu0 %v186, 126
    %v189 = vpop.permute.xlu0 %188
    %v191 = vadd.f32 %v183, %v189
    %s192 = sld [smem:[#allocation2 + $0x15]]
    %v193 = vld [vmem:[%s171 + $0x1] sm:$0xf]
    %v194 = vstv %s192
    %v195 = vmul.f32 %v194, %v193
    %v196 = vadd.f32 %v191, %v195
    %s197 = sld [smem:[#allocation2 + $0x16]]
    %v198 = vstv %s197
    %v199 = vmul.f32 %v198, %v193
    %201 = vrot.lane.b32.xlu0 %v199, 127
    %v202 = vpop.permute.xlu0 %201
    %v204 = vadd.f32 %v196, %v202
    %s205 = sld [smem:[#allocation2 + $0x17]]
    %v206 = vstv %s205
    %v207 = vmul.f32 %v206, %v193
    %209 = vrot.lane.b32.xlu0 %v207, 126
    %v210 = vpop.permute.xlu0 %209
    %v212 = vadd.f32 %v204, %v210
    %s213 = sld [smem:[#allocation2 + $0x18]]
    %v214 = vld [vmem:[%s171 + $0x2] sm:$0xf]
    %v215 = vstv %s213
    %v216 = vmul.f32 %v215, %v214
    %v217 = vadd.f32 %v212, %v216
    %s218 = sld [smem:[#allocation2 + $0x19]]
    %v219 = vstv %s218
    %v220 = vmul.f32 %v219, %v214
    %222 = vrot.lane.b32.xlu0 %v220, 127
    %v223 = vpop.permute.xlu0 %222
    %v225 = vadd.f32 %v217, %v223
    %s226 = sld [smem:[#allocation2 + $0x1a]]
    %v227 = vstv %s226
    %v228 = vmul.f32 %v227, %v214
    %230 = vrot.lane.b32.xlu0 %v228, 126
    %v231 = vpop.permute.xlu0 %230
    %v233 = vadd.f32 %v225, %v231
    %vm234 = vcmask 27648
    %235 = vst.msk [vmem:[#allocation7] sm:$0xf] %vm234, %v233
    %s236 = sld [smem:[#allocation5 + $0x1]]
    %v237 = vstv %s236
    %v238 = vadd.f32 %v237, 0.0
    %s239 = sld [smem:[#allocation2 + $0x1b]]
    %v240 = vld [vmem:[%s0] sm:$0xf]
    %v241 = vstv %s239
    %v242 = vmul.f32 %v241, %v240
    %v243 = vadd.f32 %v238, %v242
    %s244 = sld [smem:[#allocation2 + $0x1c]]
    %v245 = vstv %s244
    %v246 = vmul.f32 %v245, %v240
    %248 = vrot.lane.b32.xlu0 %v246, 127
    %v249 = vpop.permute.xlu0 %248
    %v251 = vadd.f32 %v243, %v249
    %s252 = sld [smem:[#allocation2 + $0x1d]]
    %v253 = vstv %s252
    %v254 = vmul.f32 %v253, %v240
    %256 = vrot.lane.b32.xlu0 %v254, 126
    %v257 = vpop.permute.xlu0 %256
    %v259 = vadd.f32 %v251, %v257
    %s260 = sld [smem:[#allocation2 + $0x1e]]
    %v261 = vld [vmem:[%s0 + $0x1] sm:$0xf]
    %v262 = vstv %s260
    %v263 = vmul.f32 %v262, %v261
    %v264 = vadd.f32 %v259, %v263
    %s265 = sld [smem:[#allocation2 + $0x1f]]
    %v266 = vstv %s265
    %v267 = vmul.f32 %v266, %v261
    %269 = vrot.lane.b32.xlu0 %v267, 127
    %v270 = vpop.permute.xlu0 %269
    %v272 = vadd.f32 %v264, %v270
    %s273 = sld [smem:[#allocation2 + $0x20]]
    %v274 = vstv %s273
    %v275 = vmul.f32 %v274, %v261
    %277 = vrot.lane.b32.xlu0 %v275, 126
    %v278 = vpop.permute.xlu0 %277
    %v280 = vadd.f32 %v272, %v278
    %s281 = sld [smem:[#allocation2 + $0x21]]
    %v282 = vld [vmem:[%s0 + $0x2] sm:$0xf]
    %v283 = vstv %s281
    %v284 = vmul.f32 %v283, %v282
    %v285 = vadd.f32 %v280, %v284
    %s286 = sld [smem:[#allocation2 + $0x22]]
    %v287 = vstv %s286
    %v288 = vmul.f32 %v287, %v282
    %290 = vrot.lane.b32.xlu0 %v288, 127
    %v291 = vpop.permute.xlu0 %290
    %v293 = vadd.f32 %v285, %v291
    %s294 = sld [smem:[#allocation2 + $0x23]]
    %v295 = vstv %s294
    %v296 = vmul.f32 %v295, %v282
    %298 = vrot.lane.b32.xlu0 %v296, 126
    %v299 = vpop.permute.xlu0 %298
    %v301 = vadd.f32 %v293, %v299
    %s302 = sld [smem:[#allocation2 + $0x24]]
    %v303 = vld [vmem:[%s107] sm:$0xf]
    %v304 = vstv %s302
    %v305 = vmul.f32 %v304, %v303
    %v306 = vadd.f32 %v301, %v305
    %s307 = sld [smem:[#allocation2 + $0x25]]
    %v308 = vstv %s307
    %v309 = vmul.f32 %v308, %v303
    %311 = vrot.lane.b32.xlu0 %v309, 127
    %v312 = vpop.permute.xlu0 %311
    %v314 = vadd.f32 %v306, %v312
    %s315 = sld [smem:[#allocation2 + $0x26]]
    %v316 = vstv %s315
    %v317 = vmul.f32 %v316, %v303
    %319 = vrot.lane.b32.xlu0 %v317, 126
    %v320 = vpop.permute.xlu0 %319
    %v322 = vadd.f32 %v314, %v320
    %s323 = sld [smem:[#allocation2 + $0x27]]
    %v324 = vld [vmem:[%s107 + $0x1] sm:$0xf]
    %v325 = vstv %s323
    %v326 = vmul.f32 %v325, %v324
    %v327 = vadd.f32 %v322, %v326
    %s328 = sld [smem:[#allocation2 + $0x28]]
    %v329 = vstv %s328
    %v330 = vmul.f32 %v329, %v324
    %332 = vrot.lane.b32.xlu0 %v330, 127
    %v333 = vpop.permute.xlu0 %332
    %v335 = vadd.f32 %v327, %v333
    %s336 = sld [smem:[#allocation2 + $0x29]]
    %v337 = vstv %s336
    %v338 = vmul.f32 %v337, %v324
    %340 = vrot.lane.b32.xlu0 %v338, 126
    %v341 = vpop.permute.xlu0 %340
    %v343 = vadd.f32 %v335, %v341
    %s344 = sld [smem:[#allocation2 + $0x2a]]
    %v345 = vld [vmem:[%s107 + $0x2] sm:$0xf]
    %v346 = vstv %s344
    %v347 = vmul.f32 %v346, %v345
    %v348 = vadd.f32 %v343, %v347
    %s349 = sld [smem:[#allocation2 + $0x2b]]
    %v350 = vstv %s349
    %v351 = vmul.f32 %v350, %v345
    %353 = vrot.lane.b32.xlu0 %v351, 127
    %v354 = vpop.permute.xlu0 %353
    %v356 = vadd.f32 %v348, %v354
    %s357 = sld [smem:[#allocation2 + $0x2c]]
    %v358 = vstv %s357
    %v359 = vmul.f32 %v358, %v345
    %361 = vrot.lane.b32.xlu0 %v359, 126
    %v362 = vpop.permute.xlu0 %361
    %v364 = vadd.f32 %v356, %v362
    %s365 = sld [smem:[#allocation2 + $0x2d]]
    %v366 = vld [vmem:[%s171] sm:$0xf]
    %v367 = vstv %s365
    %v368 = vmul.f32 %v367, %v366
    %v369 = vadd.f32 %v364, %v368
    %s370 = sld [smem:[#allocation2 + $0x2e]]
    %v371 = vstv %s370
    %v372 = vmul.f32 %v371, %v366
    %374 = vrot.lane.b32.xlu0 %v372, 127
    %v375 = vpop.permute.xlu0 %374
    %v377 = vadd.f32 %v369, %v375
    %s378 = sld [smem:[#allocation2 + $0x2f]]
    %v379 = vstv %s378
    %v380 = vmul.f32 %v379, %v366
    %382 = vrot.lane.b32.xlu0 %v380, 126
    %v383 = vpop.permute.xlu0 %382
    %v385 = vadd.f32 %v377, %v383
    %s386 = sld [smem:[#allocation2 + $0x30]]
    %v387 = vld [vmem:[%s171 + $0x1] sm:$0xf]
    %v388 = vstv %s386
    %v389 = vmul.f32 %v388, %v387
    %v390 = vadd.f32 %v385, %v389
    %s391 = sld [smem:[#allocation2 + $0x31]]
    %v392 = vstv %s391
    %v393 = vmul.f32 %v392, %v387
    %395 = vrot.lane.b32.xlu0 %v393, 127
    %v396 = vpop.permute.xlu0 %395
    %v398 = vadd.f32 %v390, %v396
    %s399 = sld [smem:[#allocation2 + $0x32]]
    %v400 = vstv %s399
    %v401 = vmul.f32 %v400, %v387
    %403 = vrot.lane.b32.xlu0 %v401, 126
    %v404 = vpop.permute.xlu0 %403
    %v406 = vadd.f32 %v398, %v404
    %s407 = sld [smem:[#allocation2 + $0x33]]
    %v408 = vld [vmem:[%s171 + $0x2] sm:$0xf]
    %v409 = vstv %s407
    %v410 = vmul.f32 %v409, %v408
    %v411 = vadd.f32 %v406, %v410
    %s412 = sld [smem:[#allocation2 + $0x34]]
    %v413 = vstv %s412
    %v414 = vmul.f32 %v413, %v408
    %416 = vrot.lane.b32.xlu0 %v414, 127
    %v417 = vpop.permute.xlu0 %416
    %v419 = vadd.f32 %v411, %v417
    %s420 = sld [smem:[#allocation2 + $0x35]]
    %v421 = vstv %s420
    %v422 = vmul.f32 %v421, %v408
    %424 = vrot.lane.b32.xlu0 %v422, 126
    %v425 = vpop.permute.xlu0 %424
    %v427 = vadd.f32 %v419, %v425
    %s428 = scalar_lea.vmem [#allocation7], 4
    %429 = vst.msk [vmem:[%s428] sm:$0xf] %vm234, %v427
    %s430 = sld [smem:[#allocation5 + $0x2]]
    %v431 = vstv %s430
    %v432 = vadd.f32 %v431, 0.0
    %s433 = sld [smem:[#allocation2 + $0x36]]
    %v434 = vld [vmem:[%s0] sm:$0xf]
    %v435 = vstv %s433
    %v436 = vmul.f32 %v435, %v434
    %v437 = vadd.f32 %v432, %v436
    %s438 = sld [smem:[#allocation2 + $0x37]]
    %v439 = vstv %s438
    %v440 = vmul.f32 %v439, %v434
    %442 = vrot.lane.b32.xlu0 %v440, 127
    %v443 = vpop.permute.xlu0 %442
    %v445 = vadd.f32 %v437, %v443
    %s446 = sld [smem:[#allocation2 + $0x38]]
    %v447 = vstv %s446
    %v448 = vmul.f32 %v447, %v434
    %450 = vrot.lane.b32.xlu0 %v448, 126
    %v451 = vpop.permute.xlu0 %450
    %v453 = vadd.f32 %v445, %v451
    %s454 = sld [smem:[#allocation2 + $0x39]]
    %v455 = vld [vmem:[%s0 + $0x1] sm:$0xf]
    %v456 = vstv %s454
    %v457 = vmul.f32 %v456, %v455
    %v458 = vadd.f32 %v453, %v457
    %s459 = sld [smem:[#allocation2 + $0x3a]]
    %v460 = vstv %s459
    %v461 = vmul.f32 %v460, %v455
    %463 = vrot.lane.b32.xlu0 %v461, 127
    %v464 = vpop.permute.xlu0 %463
    %v466 = vadd.f32 %v458, %v464
    %s467 = sld [smem:[#allocation2 + $0x3b]]
    %v468 = vstv %s467
    %v469 = vmul.f32 %v468, %v455
    %471 = vrot.lane.b32.xlu0 %v469, 126
    %v472 = vpop.permute.xlu0 %471
    %v474 = vadd.f32 %v466, %v472
    %s475 = sld [smem:[#allocation2 + $0x3c]]
    %v476 = vld [vmem:[%s0 + $0x2] sm:$0xf]
    %v477 = vstv %s475
    %v478 = vmul.f32 %v477, %v476
    %v479 = vadd.f32 %v474, %v478
    %s480 = sld [smem:[#allocation2 + $0x3d]]
    %v481 = vstv %s480
    %v482 = vmul.f32 %v481, %v476
    %484 = vrot.lane.b32.xlu0 %v482, 127
    %v485 = vpop.permute.xlu0 %484
    %v487 = vadd.f32 %v479, %v485
    %s488 = sld [smem:[#allocation2 + $0x3e]]
    %v489 = vstv %s488
    %v490 = vmul.f32 %v489, %v476
    %492 = vrot.lane.b32.xlu0 %v490, 126
    %v493 = vpop.permute.xlu0 %492
    %v495 = vadd.f32 %v487, %v493
    %s496 = sld [smem:[#allocation2 + $0x3f]]
    %v497 = vld [vmem:[%s107] sm:$0xf]
    %v498 = vstv %s496
    %v499 = vmul.f32 %v498, %v497
    %v500 = vadd.f32 %v495, %v499
    %s501 = sld [smem:[#allocation2 + $0x40]]
    %v502 = vstv %s501
    %v503 = vmul.f32 %v502, %v497
    %505 = vrot.lane.b32.xlu0 %v503, 127
    %v506 = vpop.permute.xlu0 %505
    %v508 = vadd.f32 %v500, %v506
    %s509 = sld [smem:[#allocation2 + $0x41]]
    %v510 = vstv %s509
    %v511 = vmul.f32 %v510, %v497
    %513 = vrot.lane.b32.xlu0 %v511, 126
    %v514 = vpop.permute.xlu0 %513
    %v516 = vadd.f32 %v508, %v514
    %s517 = sld [smem:[#allocation2 + $0x42]]
    %v518 = vld [vmem:[%s107 + $0x1] sm:$0xf]
    %v519 = vstv %s517
    %v520 = vmul.f32 %v519, %v518
    %v521 = vadd.f32 %v516, %v520
    %s522 = sld [smem:[#allocation2 + $0x43]]
    %v523 = vstv %s522
    %v524 = vmul.f32 %v523, %v518
    %526 = vrot.lane.b32.xlu0 %v524, 127
    %v527 = vpop.permute.xlu0 %526
    %v529 = vadd.f32 %v521, %v527
    %s530 = sld [smem:[#allocation2 + $0x44]]
    %v531 = vstv %s530
    %v532 = vmul.f32 %v531, %v518
    %534 = vrot.lane.b32.xlu0 %v532, 126
    %v535 = vpop.permute.xlu0 %534
    %v537 = vadd.f32 %v529, %v535
    %s538 = sld [smem:[#allocation2 + $0x45]]
    %v539 = vld [vmem:[%s107 + $0x2] sm:$0xf]
    %v540 = vstv %s538
    %v541 = vmul.f32 %v540, %v539
    %v542 = vadd.f32 %v537, %v541
    %s543 = sld [smem:[#allocation2 + $0x46]]
    %v544 = vstv %s543
    %v545 = vmul.f32 %v544, %v539
    %547 = vrot.lane.b32.xlu0 %v545, 127
    %v548 = vpop.permute.xlu0 %547
    %v550 = vadd.f32 %v542, %v548
    %s551 = sld [smem:[#allocation2 + $0x47]]
    %v552 = vstv %s551
    %v553 = vmul.f32 %v552, %v539
    %555 = vrot.lane.b32.xlu0 %v553, 126
    %v556 = vpop.permute.xlu0 %555
    %v558 = vadd.f32 %v550, %v556
    %s559 = sld [smem:[#allocation2 + $0x48]]
    %v560 = vld [vmem:[%s171] sm:$0xf]
    %v561 = vstv %s559
    %v562 = vmul.f32 %v561, %v560
    %v563 = vadd.f32 %v558, %v562
    %s564 = sld [smem:[#allocation2 + $0x49]]
    %v565 = vstv %s564
    %v566 = vmul.f32 %v565, %v560
    %568 = vrot.lane.b32.xlu0 %v566, 127
    %v569 = vpop.permute.xlu0 %568
    %v571 = vadd.f32 %v563, %v569
    %s572 = sld [smem:[#allocation2 + $0x4a]]
    %v573 = vstv %s572
    %v574 = vmul.f32 %v573, %v560
    %576 = vrot.lane.b32.xlu0 %v574, 126
    %v577 = vpop.permute.xlu0 %576
    %v579 = vadd.f32 %v571, %v577
    %s580 = sld [smem:[#allocation2 + $0x4b]]
    %v581 = vld [vmem:[%s171 + $0x1] sm:$0xf]
    %v582 = vstv %s580
    %v583 = vmul.f32 %v582, %v581
    %v584 = vadd.f32 %v579, %v583
    %s585 = sld [smem:[#allocation2 + $0x4c]]
    %v586 = vstv %s585
    %v587 = vmul.f32 %v586, %v581
    %589 = vrot.lane.b32.xlu0 %v587, 127
    %v590 = vpop.permute.xlu0 %589
    %v592 = vadd.f32 %v584, %v590
    %s593 = sld [smem:[#allocation2 + $0x4d]]
    %v594 = vstv %s593
    %v595 = vmul.f32 %v594, %v581
    %597 = vrot.lane.b32.xlu0 %v595, 126
    %v598 = vpop.permute.xlu0 %597
    %v600 = vadd.f32 %v592, %v598
    %s601 = sld [smem:[#allocation2 + $0x4e]]
    %v602 = vld [vmem:[%s171 + $0x2] sm:$0xf]
    %v603 = vstv %s601
    %v604 = vmul.f32 %v603, %v602
    %v605 = vadd.f32 %v600, %v604
    %s606 = sld [smem:[#allocation2 + $0x4f]]
    %v607 = vstv %s606
    %v608 = vmul.f32 %v607, %v602
    %610 = vrot.lane.b32.xlu0 %v608, 127
    %v611 = vpop.permute.xlu0 %610
    %v613 = vadd.f32 %v605, %v611
    %s614 = sld [smem:[#allocation2 + $0x50]]
    %v615 = vstv %s614
    %v616 = vmul.f32 %v615, %v602
    %618 = vrot.lane.b32.xlu0 %v616, 126
    %v619 = vpop.permute.xlu0 %618
    %v621 = vadd.f32 %v613, %v619
    %s622 = scalar_lea.vmem [#allocation7], 8
    %623 = vst.msk [vmem:[%s622] sm:$0xf] %vm234, %v621
    // Predicated region
    $region22: #{model_forward.1} parent=1 // pred_check
      _
    $region23: #{model_forward.1} parent=1 // pred_check_branch
      %625 = sbr.rel (0) target = $region25
    $region24: #{model_forward.1} parent=1 // pred_region
      %s627 = ssub.s32 192, 192
      %628 = vsyncadd [#allocation3], %s627
      %s629 = sshll.u32 [#allocation7], 4
      %s630 = int_to_ptr.vmem [resolvable:$true] %s629
      %635 = dma.vmem_to_hbm [thread:$0]  %s630, 192, %s3, [#allocation3], 64, 64, 4
    $region25: #{model_forward.1} parent=1 // pred_fallthru
      _
    // Predicated region
    $region26: #{model_forward.1} parent=1 // pred_check
      _
    $region27: #{model_forward.1} parent=1 // pred_check_branch
      %637 = sbr.rel (0) target = $region29
    $region28: #{model_forward.1} parent=1 // pred_region
      %638 = dma.done [#allocation3], 192
    $region29: #{model_forward.1} parent=1 // pred_fallthru
      _
    %639 = vsyncpa [#allocation3], 1
    %640 = vsyncpa [#allocation4], 1
    %641 = vsyncpa [#allocation6], 1

</llo_original>
